<compile_context>
chip_gen: v7x
topology: tpu7x:2x2x1
jax: 0.10.0
libtpu: 0.0.40
codegen_flags: <defaults>
</compile_context>

<pallas_src>
import functools

import numpy as np

import jax
import jax.numpy as jnp
from jax import lax
from jax.experimental import pallas as pl
from jax.experimental.pallas import tpu as pltpu

LANES = 128

# Packed square-weight indices ((9, 128, 128), bf16).
(W_STEM, W_B1_EXP, W_B1_SE1, W_B1_SE2, W_FOLD1,
 W_B2_SE1, W_B2_SE2, W_FOLD2, W_ADAPT) = range(9)
NW = 9
# Packed bias rows ((11, 128), f32).
(B_STEM, B_B1_EXP, B_B1_DW, B_B1_SE1, B_B1_SE2, B_FOLD1,
 B_B2_DW, B_B2_SE1, B_B2_SE2, B_FOLD2, B_ADAPT) = range(11)
NB = 11


def _sigmoid(y):
    # Numerically stable sigmoid (single EUP transcendental, no overflow).
    return 0.5 * (jnp.tanh(0.5 * y) + 1.0)


def _swish(y):
    return y * _sigmoid(y)


def _mxu(a, w):
    # bf16 MXU operands, f32 accumulation.
    return jnp.dot(a.astype(jnp.bfloat16), w, preferred_element_type=jnp.float32)


# ----------------------------------------------------------------------------
# Fused kernel: stem conv -> MBConv x2 -> (folded) top 1x1 -> adapter.
# One grid step handles `bb` images, all matmuls have the batch folded into M.
# ----------------------------------------------------------------------------
def _fused_encoder_kernel(patches_ref, w_ref, b_ref, dw_ref, sel_ref, o_ref,
                          *, dims, bb, emb):
    H1, W1, H2, W2 = dims
    hw1, hw2 = H1 * W1, H2 * W2

    def mat(i):                      # (128, 128) bf16 weight
        return w_ref[i]

    def bias(i):                     # (1, 128) f32 bias row
        return b_ref[i:i + 1, :]

    def dwconv(e3, hw, w, dwk):
        """3x3 depthwise conv (stride 1, zero pad) on a (bb, hw, 128) slab.

        Row-shifted slices of a per-image zero-padded value replace the 2-D
        window reads; cross-row wrap-around of the flat layout is cancelled
        by left/right column masks.  Everything stays in vregs -- no scratch
        stores, no per-tap ref re-reads.
        """
        pad = ((w + 1 + 7) // 8) * 8           # sublane-aligned, >= w + 1
        zpad = jnp.zeros((bb, pad, LANES), jnp.float32)
        xp = jnp.concatenate([zpad, e3, zpad], axis=1)
        ids = lax.broadcasted_iota(jnp.int32, (1, hw, LANES), 1)
        col = (jnp.bitwise_and(ids, w - 1) if (w & (w - 1)) == 0
               else jnp.remainder(ids, w))
        not_l = (col != 0).astype(jnp.float32)
        not_r = (col != w - 1).astype(jnp.float32)

        def tap(di, dj):
            o = (di - 1) * w + (dj - 1) + pad
            return xp[:, o:o + hw, :] * dwk[3 * di + dj:3 * di + dj + 1, :]

        left = tap(0, 0) + tap(1, 0) + tap(2, 0)
        mid = tap(0, 1) + tap(1, 1) + tap(2, 1)
        right = tap(0, 2) + tap(1, 2) + tap(2, 2)
        return left * not_l + mid + right * not_r

    def se_gate(hdw3, hw, i_se1, i_se2, bi_se1, bi_se2):
        s = jnp.sum(hdw3, axis=1) * (1.0 / hw)                # (bb, 128)
        z = _swish(_mxu(s, mat(i_se1)) + bias(bi_se1))
        return _sigmoid(_mxu(z, mat(i_se2)) + bias(bi_se2))   # (bb, 128)

    # ---- stem 3x3 conv + swish (im2col taps arrive pre-gathered) ----
    x1 = _swish(_mxu(patches_ref[...].reshape(bb * hw1, LANES), mat(W_STEM))
                + bias(B_STEM))

    # ---- MBConv block 1: expand -> depthwise -> squeeze-excite ----
    e1 = _swish(_mxu(x1, mat(W_B1_EXP)) + bias(B_B1_EXP)).reshape(bb, hw1, LANES)
    hdw1 = _swish(dwconv(e1, hw1, W1, dw_ref[0]) + bias(B_B1_DW))
    g1 = se_gate(hdw1, hw1, W_B1_SE1, W_B1_SE2, B_B1_SE1, B_B1_SE2)

    # 2x2 decimation as one exact f32 selection matmul, SE scale AFTER the
    # decimation, then the folded (block1.proj @ block2.expand) 1x1 + swish.
    dec = jnp.dot(sel_ref[...], hdw1.reshape(bb * hw1, LANES),
                  preferred_element_type=jnp.float32)          # (bb*hw2, 128)
    dec = (dec.reshape(bb, hw2, LANES) * g1.reshape(bb, 1, LANES)
           ).reshape(bb * hw2, LANES)
    e2 = _swish(_mxu(dec, mat(W_FOLD1)) + bias(B_FOLD1)).reshape(bb, hw2, LANES)

    # ---- MBConv block 2: depthwise -> squeeze-excite -> folded proj@top ----
    hdw2 = _swish(dwconv(e2, hw2, W2, dw_ref[1]) + bias(B_B2_DW))
    g2 = se_gate(hdw2, hw2, W_B2_SE1, W_B2_SE2, B_B2_SE1, B_B2_SE2)
    h2 = (hdw2 * g2.reshape(bb, 1, LANES)).reshape(bb * hw2, LANES)
    t = _swish(_mxu(h2, mat(W_FOLD2)) + bias(B_FOLD2))

    # ---- adapter Linear; slice to the logical emb width in the epilogue ----
    out = _mxu(t, mat(W_ADAPT)) + bias(B_ADAPT)
    o_ref[...] = out.reshape(bb, hw2, LANES)[:, :, :emb]


# ----------------------------------------------------------------------------
# Wrapper-side packing / layout plumbing (cheap, done once per call)
# ----------------------------------------------------------------------------
def _pack_params(p):
    """Zero-pad weights to 128 lanes, fold back-to-back linears, stack (bf16)."""
    def matp(w):
        return jnp.pad(w, ((0, LANES - w.shape[0]), (0, LANES - w.shape[1])))

    def vecp(v):
        return jnp.pad(v, (0, LANES - v.shape[0]))

    b1, b2 = p["block1"], p["block2"]
    # Fold: block1.proj -> block2.expand, block2.proj -> top (no nonlinearity
    # or residual in between in this synthetic trunk).
    w_fold1 = b1["proj_w"] @ b2["expand_w"]
    b_fold1 = b1["proj_b"] @ b2["expand_w"] + b2["expand_b"]
    w_fold2 = b2["proj_w"] @ p["top_w"]
    b_fold2 = b2["proj_b"] @ p["top_w"] + p["top_b"]

    w_stack = jnp.stack([
        matp(p["stem_w"]), matp(b1["expand_w"]), matp(b1["se1_w"]),
        matp(b1["se2_w"]), matp(w_fold1), matp(b2["se1_w"]),
        matp(b2["se2_w"]), matp(w_fold2), matp(p["adapter_w"]),
    ]).astype(jnp.bfloat16)
    b_stack = jnp.stack([
        vecp(p["stem_b"]), vecp(b1["expand_b"]), vecp(b1["dw_b"]),
        vecp(b1["se1_b"]), vecp(b1["se2_b"]), vecp(b_fold1),
        vecp(b2["dw_b"]), vecp(b2["se1_b"]), vecp(b2["se2_b"]),
        vecp(b_fold2), vecp(p["adapter_b"]),
    ])
    dw_stack = jnp.stack([
        jnp.pad(b1["dw_w"], ((0, 0), (0, LANES - b1["dw_w"].shape[1]))),
        jnp.pad(b2["dw_w"], ((0, 0), (0, LANES - b2["dw_w"].shape[1]))),
    ])
    return w_stack, b_stack, dw_stack


def _stem_patches(x, H1, W1):
    """im2col for the stem 3x3 conv, only at the surviving (H1, W1) grid."""
    B = x.shape[0]
    taps = [x[:, di:di + 4 * H1:4, dj:dj + 4 * W1:4, :]
            for di in range(3) for dj in range(3)]
    patches = jnp.stack(taps, axis=3).reshape(B, H1 * W1, 9 * x.shape[3])
    patches = jnp.pad(patches, ((0, 0), (0, 0), (0, LANES - patches.shape[2])))
    return patches.astype(jnp.bfloat16)


def _decimation_matrix(bb, H1, W1):
    """Block-diagonal 0/1 matrix selecting the even (h, w) positions."""
    H2, W2 = H1 // 2, W1 // 2
    m = np.zeros((bb * H2 * W2, bb * H1 * W1), np.float32)
    for b in range(bb):
        for ph in range(H2):
            for pw in range(W2):
                r = (b * H2 + ph) * W2 + pw
                c = (b * H1 + 2 * ph) * W1 + 2 * pw
                m[r, c] = 1.0
    return jnp.asarray(m)


# ----------------------------------------------------------------------------
# EfficientNetEncoder.forward
# ----------------------------------------------------------------------------
def efficientnet_encoder_forward(params, x):
    # PyTorch: if x.shape[3] == 3: x = x.permute(0, 3, 1, 2).float()
    # We compute in NHWC directly (the permute is a pure layout change).
    x = x.astype(jnp.float32)
    B, H, W, C = x.shape
    assert C == 3 and H % 8 == 0 and W % 8 == 0
    H1, W1 = H // 4, W // 4          # grid after stem (/2) + block1 decimation
    H2, W2 = H1 // 2, W1 // 2        # grid after block2 decimation
    seq = H2 * W2                    # last_hidden_state spatial -> sequence
    emb = params["adapter_w"].shape[1]
    assert emb <= LANES

    # >= 2 'parallel' grid blocks (v7x: one per TensorCore); the images inside
    # a block are folded into the matmul M dimension (v5e/v6e batch-into-M).
    grid_b = 2 if (B >= 2 and B % 2 == 0) else B
    bb = B // grid_b

    w_stack, b_stack, dw_stack = _pack_params(params)
    patches = _stem_patches(x, H1, W1)
    sel = _decimation_matrix(bb, H1, W1)

    out = pl.pallas_call(
        functools.partial(_fused_encoder_kernel,
                          dims=(H1, W1, H2, W2), bb=bb, emb=emb),
        out_shape=jax.ShapeDtypeStruct((B, seq, emb), jnp.float32),
        grid_spec=pltpu.PrefetchScalarGridSpec(
            num_scalar_prefetch=0,
            grid=(grid_b,),
            in_specs=[
                pl.BlockSpec((bb, H1 * W1, LANES), lambda g: (g, 0, 0)),
                pl.BlockSpec((NW, LANES, LANES), lambda g: (0, 0, 0)),
                pl.BlockSpec((NB, LANES), lambda g: (0, 0)),
                pl.BlockSpec((2, 9, LANES), lambda g: (0, 0, 0)),
                pl.BlockSpec((bb * seq, bb * H1 * W1), lambda g: (0, 0)),
            ],
            out_specs=pl.BlockSpec((bb, seq, emb), lambda g: (g, 0, 0)),
        ),
        compiler_params=pltpu.CompilerParams(
            dimension_semantics=("parallel",)),
    )(patches, w_stack, b_stack, dw_stack, sel)
    return out


# ----------------------------------------------------------------------------
# Pure-JAX reference (same packed/folded weights, plain 2-D halo depthwise)
# ----------------------------------------------------------------------------
def _reference_forward(params, x):
    x = x.astype(jnp.float32)
    B, H, W, _ = x.shape
    H1, W1 = H // 4, W // 4
    H2, W2 = H1 // 2, W1 // 2
    emb = params["adapter_w"].shape[1]
    w_s, b_s, dw_s = _pack_params(params)
    patches = _stem_patches(x, H1, W1)

    def dw2d(e, Hh, Ww, blk):
        ep = jnp.pad(e.reshape(Hh, Ww, LANES), ((1, 1), (1, 1), (0, 0)))
        acc = ep[0:Hh, 0:Ww, :] * dw_s[blk, 0:1, :]
        for t in range(1, 9):
            di, dj = t // 3, t % 3
            acc = acc + ep[di:di + Hh, dj:dj + Ww, :] * dw_s[blk, t:t + 1, :]
        return acc.reshape(Hh * Ww, LANES)

    def se(hdw, i1, i2, bi1, bi2):
        s = jnp.mean(hdw, axis=0, keepdims=True)
        z = _swish(_mxu(s, w_s[i1]) + b_s[bi1:bi1 + 1])
        return _sigmoid(_mxu(z, w_s[i2]) + b_s[bi2:bi2 + 1])

    outs = []
    for bi in range(B):
        x1 = _swish(_mxu(patches[bi], w_s[W_STEM]) + b_s[B_STEM:B_STEM + 1])
        e1 = _swish(_mxu(x1, w_s[W_B1_EXP]) + b_s[B_B1_EXP:B_B1_EXP + 1])
        hdw1 = _swish(dw2d(e1, H1, W1, 0) + b_s[B_B1_DW:B_B1_DW + 1])
        g1 = se(hdw1, W_B1_SE1, W_B1_SE2, B_B1_SE1, B_B1_SE2)
        dec = hdw1.reshape(H1, W1, LANES)[::2, ::2, :].reshape(H2 * W2, LANES) * g1
        e2 = _swish(_mxu(dec, w_s[W_FOLD1]) + b_s[B_FOLD1:B_FOLD1 + 1])
        hdw2 = _swish(dw2d(e2, H2, W2, 1) + b_s[B_B2_DW:B_B2_DW + 1])
        g2 = se(hdw2, W_B2_SE1, W_B2_SE2, B_B2_SE1, B_B2_SE2)
        t = _swish(_mxu(hdw2 * g2, w_s[W_FOLD2]) + b_s[B_FOLD2:B_FOLD2 + 1])
        outs.append(_mxu(t, w_s[W_ADAPT]) + b_s[B_ADAPT:B_ADAPT + 1])
    out = jnp.stack(outs, axis=0)
    return out[:, :, :emb]


def init_params(key, hidden_dim=64, emb_dim=96):
    keys = iter(jax.random.split(key, 32))

    def w(shape, scale=0.05):
        return jax.random.normal(next(keys), shape, jnp.float32) * scale

    def b(n):
        return jnp.zeros((n,), jnp.float32)

    return {
        "stem_w": w((27, 16)), "stem_b": b(16),
        "block1": dict(expand_w=w((16, 64)), expand_b=b(64),
                       dw_w=w((9, 64)), dw_b=b(64),
                       se1_w=w((64, 16)), se1_b=b(16),
                       se2_w=w((16, 64)), se2_b=b(64),
                       proj_w=w((64, 24)), proj_b=b(24)),
        "block2": dict(expand_w=w((24, 96)), expand_b=b(96),
                       dw_w=w((9, 96)), dw_b=b(96),
                       se1_w=w((96, 24)), se1_b=b(24),
                       se2_w=w((24, 96)), se2_b=b(96),
                       proj_w=w((96, 40)), proj_b=b(40)),
        "top_w": w((40, hidden_dim)), "top_b": b(hidden_dim),
        "adapter_w": w((hidden_dim, emb_dim)), "adapter_b": w((emb_dim,), 0.01),
    }


if __name__ == "__main__":
    key = jax.random.PRNGKey(0)
    pkey, xkey = jax.random.split(key)
    # obs_dim = [3, 32, 16] (C, H, W); NHWC input so the permute branch of the
    # PyTorch forward would trigger (x.shape[3] == 3).
    B, H, W, C = 2, 32, 16, 3
    x = jax.random.uniform(xkey, (B, H, W, C), jnp.float32)
    params = init_params(pkey, hidden_dim=64, emb_dim=96)

    fwd = jax.jit(efficientnet_encoder_forward)
    out = jax.block_until_ready(fwd(params, x))

    # last_hidden_state spatial is (4, 2) -> sequence length 8
    assert out.shape == (B, 8, 96), out.shape
    assert out.dtype == jnp.float32

    ref = jax.block_until_ready(jax.jit(_reference_forward)(params, x))
    err = float(jnp.max(jnp.abs(out - ref)))
    assert err < 2e-3, f"kernel/reference mismatch, max abs err = {err}"

    print("KERNEL_OK")
</pallas_src>

<mosaic_0001>
module attributes {stable_mosaic.version = 11 : i64} {
  func.func @_fused_encoder_kernel(%arg0: i32, %arg1: memref<1x32x128xbf16, #tpu.memory_space<vmem>>, %arg2: memref<9x128x128xbf16, #tpu.memory_space<vmem>>, %arg3: memref<11x128xf32, #tpu.memory_space<vmem>>, %arg4: memref<2x9x128xf32, #tpu.memory_space<vmem>>, %arg5: memref<8x32xf32, #tpu.memory_space<vmem>>, %arg6: memref<1x8x96xf32, #tpu.memory_space<vmem>>) attributes {dimension_semantics = [#tpu.dimension_semantics<parallel>], iteration_bounds = array<i64: 2>, scalar_prefetch = 0 : i64, scratch_operands = 0 : i64, tpu.core_type = #tpu.core_type<tc>, window_params = [{transform_indices = @transform_0, window_bounds = array<i64: 1, 32, 128>}, {pipeline_mode = #tpu.pipeline_mode<synchronous>, transform_indices = @transform_1, window_bounds = array<i64: 9, 128, 128>}, {pipeline_mode = #tpu.pipeline_mode<synchronous>, transform_indices = @transform_2, window_bounds = array<i64: 11, 128>}, {pipeline_mode = #tpu.pipeline_mode<synchronous>, transform_indices = @transform_3, window_bounds = array<i64: 2, 9, 128>}, {pipeline_mode = #tpu.pipeline_mode<synchronous>, transform_indices = @transform_4, window_bounds = array<i64: 8, 32>}, {transform_indices = @transform_5, window_bounds = array<i64: 1, 8, 96>}]} {
    %c0 = arith.constant 0 : index
    %c0_0 = arith.constant 0 : index
    %c0_1 = arith.constant 0 : index
    %0 = vector.load %arg1[%c0, %c0_0, %c0_1] : memref<1x32x128xbf16, #tpu.memory_space<vmem>>, vector<1x32x128xbf16>
    %1 = vector.shape_cast %0 : vector<1x32x128xbf16> to vector<32x128xbf16>
    %c0_2 = arith.constant 0 : index
    %c0_3 = arith.constant 0 : index
    %c0_4 = arith.constant 0 : index
    %2 = vector.load %arg2[%c0_2, %c0_3, %c0_4] : memref<9x128x128xbf16, #tpu.memory_space<vmem>>, vector<1x128x128xbf16>
    %3 = vector.shape_cast %2 : vector<1x128x128xbf16> to vector<128x128xbf16>
    %cst = arith.constant dense<0.000000e+00> : vector<32x128xf32>
    %4 = tpu.matmul %1, %3, %cst {dimension_numbers = #tpu.dot_dimension_numbers<[1], [0], [0], [1], [0, 0, 1, 1], [], []>} : vector<32x128xbf16>, vector<128x128xbf16>, vector<32x128xf32> -> vector<32x128xf32>
    %c0_5 = arith.constant 0 : index
    %c0_6 = arith.constant 0 : index
    %5 = vector.load %arg3[%c0_5, %c0_6] : memref<11x128xf32, #tpu.memory_space<vmem>>, vector<1x128xf32>
    %6 = vector.broadcast %5 : vector<1x128xf32> to vector<32x128xf32>
    %7 = arith.addf %4, %6 : vector<32x128xf32>
    %cst_7 = arith.constant 5.000000e-01 : f32
    %8 = vector.broadcast %cst_7 : f32 to vector<32x128xf32>
    %9 = arith.mulf %8, %7 : vector<32x128xf32>
    %10 = math.tanh %9 : vector<32x128xf32>
    %cst_8 = arith.constant 1.000000e+00 : f32
    %11 = vector.broadcast %cst_8 : f32 to vector<32x128xf32>
    %12 = arith.addf %10, %11 : vector<32x128xf32>
    %cst_9 = arith.constant 5.000000e-01 : f32
    %13 = vector.broadcast %cst_9 : f32 to vector<32x128xf32>
    %14 = arith.mulf %13, %12 : vector<32x128xf32>
    %15 = arith.mulf %7, %14 : vector<32x128xf32>
    %c1 = arith.constant 1 : index
    %c0_10 = arith.constant 0 : index
    %c0_11 = arith.constant 0 : index
    %16 = vector.load %arg2[%c1, %c0_10, %c0_11] : memref<9x128x128xbf16, #tpu.memory_space<vmem>>, vector<1x128x128xbf16>
    %17 = vector.shape_cast %16 : vector<1x128x128xbf16> to vector<128x128xbf16>
    %18 = arith.truncf %15 : vector<32x128xf32> to vector<32x128xbf16>
    %cst_12 = arith.constant dense<0.000000e+00> : vector<32x128xf32>
    %19 = tpu.matmul %18, %17, %cst_12 {dimension_numbers = #tpu.dot_dimension_numbers<[1], [0], [0], [1], [0, 0, 1, 1], [], []>} : vector<32x128xbf16>, vector<128x128xbf16>, vector<32x128xf32> -> vector<32x128xf32>
    %c1_13 = arith.constant 1 : index
    %c0_14 = arith.constant 0 : index
    %20 = vector.load %arg3[%c1_13, %c0_14] : memref<11x128xf32, #tpu.memory_space<vmem>>, vector<1x128xf32>
    %21 = vector.broadcast %20 : vector<1x128xf32> to vector<32x128xf32>
    %22 = arith.addf %19, %21 : vector<32x128xf32>
    %cst_15 = arith.constant 5.000000e-01 : f32
    %23 = vector.broadcast %cst_15 : f32 to vector<32x128xf32>
    %24 = arith.mulf %23, %22 : vector<32x128xf32>
    %25 = math.tanh %24 : vector<32x128xf32>
    %cst_16 = arith.constant 1.000000e+00 : f32
    %26 = vector.broadcast %cst_16 : f32 to vector<32x128xf32>
    %27 = arith.addf %25, %26 : vector<32x128xf32>
    %cst_17 = arith.constant 5.000000e-01 : f32
    %28 = vector.broadcast %cst_17 : f32 to vector<32x128xf32>
    %29 = arith.mulf %28, %27 : vector<32x128xf32>
    %30 = arith.mulf %22, %29 : vector<32x128xf32>
    %31 = vector.shape_cast %30 : vector<32x128xf32> to vector<1x32x128xf32>
    %c0_18 = arith.constant 0 : index
    %c0_19 = arith.constant 0 : index
    %c0_20 = arith.constant 0 : index
    %32 = vector.load %arg4[%c0_18, %c0_19, %c0_20] : memref<2x9x128xf32, #tpu.memory_space<vmem>>, vector<1x9x128xf32>
    %33 = vector.shape_cast %32 : vector<1x9x128xf32> to vector<9x128xf32>
    %cst_21 = arith.constant 0.000000e+00 : f32
    %34 = vector.broadcast %cst_21 : f32 to vector<1x8x128xf32>
    %35 = tpu.concatenate %34, %31, %34 in 1 : vector<1x8x128xf32>, vector<1x32x128xf32>, vector<1x8x128xf32> -> vector<1x48x128xf32>
    %36 = tpu.iota {dimensions = array<i32: 1>} : vector<1x32x128xi32>
    %c3_i32 = arith.constant 3 : i32
    %37 = vector.broadcast %c3_i32 : i32 to vector<1x32x128xi32>
    %38 = arith.andi %36, %37 : vector<1x32x128xi32>
    %c0_i32 = arith.constant 0 : i32
    %39 = vector.broadcast %c0_i32 : i32 to vector<1x32x128xi32>
    %40 = arith.cmpi ne, %38, %39 : vector<1x32x128xi32>
    %41 = arith.extui %40 : vector<1x32x128xi1> to vector<1x32x128xi32>
    %42 = arith.sitofp %41 : vector<1x32x128xi32> to vector<1x32x128xf32>
    %c3_i32_22 = arith.constant 3 : i32
    %43 = vector.broadcast %c3_i32_22 : i32 to vector<1x32x128xi32>
    %44 = arith.cmpi ne, %38, %43 : vector<1x32x128xi32>
    %45 = arith.extui %44 : vector<1x32x128xi1> to vector<1x32x128xi32>
    %46 = arith.sitofp %45 : vector<1x32x128xi32> to vector<1x32x128xf32>
    %47 = vector.extract_strided_slice %35 {offsets = [0, 3, 0], sizes = [1, 32, 128], strides = [1, 1, 1]} : vector<1x48x128xf32> to vector<1x32x128xf32>
    %48 = vector.extract_strided_slice %33 {offsets = [0, 0], sizes = [1, 128], strides = [1, 1]} : vector<9x128xf32> to vector<1x128xf32>
    %49 = vector.shape_cast %48 : vector<1x128xf32> to vector<1x1x128xf32>
    %50 = vector.broadcast %49 : vector<1x1x128xf32> to vector<1x32x128xf32>
    %51 = arith.mulf %47, %50 : vector<1x32x128xf32>
    %52 = vector.extract_strided_slice %35 {offsets = [0, 7, 0], sizes = [1, 32, 128], strides = [1, 1, 1]} : vector<1x48x128xf32> to vector<1x32x128xf32>
    %53 = vector.extract_strided_slice %33 {offsets = [3, 0], sizes = [1, 128], strides = [1, 1]} : vector<9x128xf32> to vector<1x128xf32>
    %54 = vector.shape_cast %53 : vector<1x128xf32> to vector<1x1x128xf32>
    %55 = vector.broadcast %54 : vector<1x1x128xf32> to vector<1x32x128xf32>
    %56 = arith.mulf %52, %55 : vector<1x32x128xf32>
    %57 = arith.addf %51, %56 : vector<1x32x128xf32>
    %58 = vector.extract_strided_slice %35 {offsets = [0, 11, 0], sizes = [1, 32, 128], strides = [1, 1, 1]} : vector<1x48x128xf32> to vector<1x32x128xf32>
    %59 = vector.extract_strided_slice %33 {offsets = [6, 0], sizes = [1, 128], strides = [1, 1]} : vector<9x128xf32> to vector<1x128xf32>
    %60 = vector.shape_cast %59 : vector<1x128xf32> to vector<1x1x128xf32>
    %61 = vector.broadcast %60 : vector<1x1x128xf32> to vector<1x32x128xf32>
    %62 = arith.mulf %58, %61 : vector<1x32x128xf32>
    %63 = arith.addf %57, %62 : vector<1x32x128xf32>
    %64 = vector.extract_strided_slice %35 {offsets = [0, 4, 0], sizes = [1, 32, 128], strides = [1, 1, 1]} : vector<1x48x128xf32> to vector<1x32x128xf32>
    %65 = vector.extract_strided_slice %33 {offsets = [1, 0], sizes = [1, 128], strides = [1, 1]} : vector<9x128xf32> to vector<1x128xf32>
    %66 = vector.shape_cast %65 : vector<1x128xf32> to vector<1x1x128xf32>
    %67 = vector.broadcast %66 : vector<1x1x128xf32> to vector<1x32x128xf32>
    %68 = arith.mulf %64, %67 : vector<1x32x128xf32>
    %69 = vector.extract_strided_slice %35 {offsets = [0, 8, 0], sizes = [1, 32, 128], strides = [1, 1, 1]} : vector<1x48x128xf32> to vector<1x32x128xf32>
    %70 = vector.extract_strided_slice %33 {offsets = [4, 0], sizes = [1, 128], strides = [1, 1]} : vector<9x128xf32> to vector<1x128xf32>
    %71 = vector.shape_cast %70 : vector<1x128xf32> to vector<1x1x128xf32>
    %72 = vector.broadcast %71 : vector<1x1x128xf32> to vector<1x32x128xf32>
    %73 = arith.mulf %69, %72 : vector<1x32x128xf32>
    %74 = arith.addf %68, %73 : vector<1x32x128xf32>
    %75 = vector.extract_strided_slice %35 {offsets = [0, 12, 0], sizes = [1, 32, 128], strides = [1, 1, 1]} : vector<1x48x128xf32> to vector<1x32x128xf32>
    %76 = vector.extract_strided_slice %33 {offsets = [7, 0], sizes = [1, 128], strides = [1, 1]} : vector<9x128xf32> to vector<1x128xf32>
    %77 = vector.shape_cast %76 : vector<1x128xf32> to vector<1x1x128xf32>
    %78 = vector.broadcast %77 : vector<1x1x128xf32> to vector<1x32x128xf32>
    %79 = arith.mulf %75, %78 : vector<1x32x128xf32>
    %80 = arith.addf %74, %79 : vector<1x32x128xf32>
    %81 = vector.extract_strided_slice %35 {offsets = [0, 5, 0], sizes = [1, 32, 128], strides = [1, 1, 1]} : vector<1x48x128xf32> to vector<1x32x128xf32>
    %82 = vector.extract_strided_slice %33 {offsets = [2, 0], sizes = [1, 128], strides = [1, 1]} : vector<9x128xf32> to vector<1x128xf32>
    %83 = vector.shape_cast %82 : vector<1x128xf32> to vector<1x1x128xf32>
    %84 = vector.broadcast %83 : vector<1x1x128xf32> to vector<1x32x128xf32>
    %85 = arith.mulf %81, %84 : vector<1x32x128xf32>
    %86 = vector.extract_strided_slice %35 {offsets = [0, 9, 0], sizes = [1, 32, 128], strides = [1, 1, 1]} : vector<1x48x128xf32> to vector<1x32x128xf32>
    %87 = vector.extract_strided_slice %33 {offsets = [5, 0], sizes = [1, 128], strides = [1, 1]} : vector<9x128xf32> to vector<1x128xf32>
    %88 = vector.shape_cast %87 : vector<1x128xf32> to vector<1x1x128xf32>
    %89 = vector.broadcast %88 : vector<1x1x128xf32> to vector<1x32x128xf32>
    %90 = arith.mulf %86, %89 : vector<1x32x128xf32>
    %91 = arith.addf %85, %90 : vector<1x32x128xf32>
    %92 = vector.extract_strided_slice %35 {offsets = [0, 13, 0], sizes = [1, 32, 128], strides = [1, 1, 1]} : vector<1x48x128xf32> to vector<1x32x128xf32>
    %93 = vector.extract_strided_slice %33 {offsets = [8, 0], sizes = [1, 128], strides = [1, 1]} : vector<9x128xf32> to vector<1x128xf32>
    %94 = vector.shape_cast %93 : vector<1x128xf32> to vector<1x1x128xf32>
    %95 = vector.broadcast %94 : vector<1x1x128xf32> to vector<1x32x128xf32>
    %96 = arith.mulf %92, %95 : vector<1x32x128xf32>
    %97 = arith.addf %91, %96 : vector<1x32x128xf32>
    %98 = arith.mulf %63, %42 : vector<1x32x128xf32>
    %99 = arith.addf %98, %80 : vector<1x32x128xf32>
    %100 = arith.mulf %97, %46 : vector<1x32x128xf32>
    %101 = arith.addf %99, %100 : vector<1x32x128xf32>
    %c2 = arith.constant 2 : index
    %c0_23 = arith.constant 0 : index
    %102 = vector.load %arg3[%c2, %c0_23] : memref<11x128xf32, #tpu.memory_space<vmem>>, vector<1x128xf32>
    %103 = vector.shape_cast %102 : vector<1x128xf32> to vector<1x1x128xf32>
    %104 = vector.broadcast %103 : vector<1x1x128xf32> to vector<1x32x128xf32>
    %105 = arith.addf %101, %104 : vector<1x32x128xf32>
    %cst_24 = arith.constant 5.000000e-01 : f32
    %106 = vector.broadcast %cst_24 : f32 to vector<1x32x128xf32>
    %107 = arith.mulf %106, %105 : vector<1x32x128xf32>
    %108 = math.tanh %107 : vector<1x32x128xf32>
    %cst_25 = arith.constant 1.000000e+00 : f32
    %109 = vector.broadcast %cst_25 : f32 to vector<1x32x128xf32>
    %110 = arith.addf %108, %109 : vector<1x32x128xf32>
    %cst_26 = arith.constant 5.000000e-01 : f32
    %111 = vector.broadcast %cst_26 : f32 to vector<1x32x128xf32>
    %112 = arith.mulf %111, %110 : vector<1x32x128xf32>
    %113 = arith.mulf %105, %112 : vector<1x32x128xf32>
    %cst_27 = arith.constant dense<0.000000e+00> : vector<1x128xf32>
    %114 = vector.multi_reduction <add>, %113, %cst_27 [1] : vector<1x32x128xf32> to vector<1x128xf32>
    %cst_28 = arith.constant 3.125000e-02 : f32
    %115 = vector.broadcast %cst_28 : f32 to vector<1x128xf32>
    %116 = arith.mulf %114, %115 : vector<1x128xf32>
    %c2_29 = arith.constant 2 : index
    %c0_30 = arith.constant 0 : index
    %c0_31 = arith.constant 0 : index
    %117 = vector.load %arg2[%c2_29, %c0_30, %c0_31] : memref<9x128x128xbf16, #tpu.memory_space<vmem>>, vector<1x128x128xbf16>
    %118 = vector.shape_cast %117 : vector<1x128x128xbf16> to vector<128x128xbf16>
    %119 = arith.truncf %116 : vector<1x128xf32> to vector<1x128xbf16>
    %cst_32 = arith.constant dense<0.000000e+00> : vector<1x128xf32>
    %120 = tpu.matmul %119, %118, %cst_32 {dimension_numbers = #tpu.dot_dimension_numbers<[1], [0], [0], [1], [0, 0, 1, 1], [], []>} : vector<1x128xbf16>, vector<128x128xbf16>, vector<1x128xf32> -> vector<1x128xf32>
    %c3 = arith.constant 3 : index
    %c0_33 = arith.constant 0 : index
    %121 = vector.load %arg3[%c3, %c0_33] : memref<11x128xf32, #tpu.memory_space<vmem>>, vector<1x128xf32>
    %122 = arith.addf %120, %121 : vector<1x128xf32>
    %cst_34 = arith.constant 5.000000e-01 : f32
    %123 = vector.broadcast %cst_34 : f32 to vector<1x128xf32>
    %124 = arith.mulf %123, %122 : vector<1x128xf32>
    %125 = math.tanh %124 : vector<1x128xf32>
    %cst_35 = arith.constant 1.000000e+00 : f32
    %126 = vector.broadcast %cst_35 : f32 to vector<1x128xf32>
    %127 = arith.addf %125, %126 : vector<1x128xf32>
    %cst_36 = arith.constant 5.000000e-01 : f32
    %128 = vector.broadcast %cst_36 : f32 to vector<1x128xf32>
    %129 = arith.mulf %128, %127 : vector<1x128xf32>
    %130 = arith.mulf %122, %129 : vector<1x128xf32>
    %c3_37 = arith.constant 3 : index
    %c0_38 = arith.constant 0 : index
    %c0_39 = arith.constant 0 : index
    %131 = vector.load %arg2[%c3_37, %c0_38, %c0_39] : memref<9x128x128xbf16, #tpu.memory_space<vmem>>, vector<1x128x128xbf16>
    %132 = vector.shape_cast %131 : vector<1x128x128xbf16> to vector<128x128xbf16>
    %133 = arith.truncf %130 : vector<1x128xf32> to vector<1x128xbf16>
    %cst_40 = arith.constant dense<0.000000e+00> : vector<1x128xf32>
    %134 = tpu.matmul %133, %132, %cst_40 {dimension_numbers = #tpu.dot_dimension_numbers<[1], [0], [0], [1], [0, 0, 1, 1], [], []>} : vector<1x128xbf16>, vector<128x128xbf16>, vector<1x128xf32> -> vector<1x128xf32>
    %c4 = arith.constant 4 : index
    %c0_41 = arith.constant 0 : index
    %135 = vector.load %arg3[%c4, %c0_41] : memref<11x128xf32, #tpu.memory_space<vmem>>, vector<1x128xf32>
    %136 = arith.addf %134, %135 : vector<1x128xf32>
    %cst_42 = arith.constant 5.000000e-01 : f32
    %137 = vector.broadcast %cst_42 : f32 to vector<1x128xf32>
    %138 = arith.mulf %137, %136 : vector<1x128xf32>
    %139 = math.tanh %138 : vector<1x128xf32>
    %cst_43 = arith.constant 1.000000e+00 : f32
    %140 = vector.broadcast %cst_43 : f32 to vector<1x128xf32>
    %141 = arith.addf %139, %140 : vector<1x128xf32>
    %cst_44 = arith.constant 5.000000e-01 : f32
    %142 = vector.broadcast %cst_44 : f32 to vector<1x128xf32>
    %143 = arith.mulf %142, %141 : vector<1x128xf32>
    %c0_45 = arith.constant 0 : index
    %c0_46 = arith.constant 0 : index
    %144 = vector.load %arg5[%c0_45, %c0_46] : memref<8x32xf32, #tpu.memory_space<vmem>>, vector<8x32xf32>
    %145 = vector.shape_cast %113 : vector<1x32x128xf32> to vector<32x128xf32>
    %cst_47 = arith.constant dense<0.000000e+00> : vector<8x128xf32>
    %146 = tpu.matmul %144, %145, %cst_47 {dimension_numbers = #tpu.dot_dimension_numbers<[1], [0], [0], [1], [0, 0, 1, 1], [], []>} : vector<8x32xf32>, vector<32x128xf32>, vector<8x128xf32> -> vector<8x128xf32>
    %147 = vector.shape_cast %146 : vector<8x128xf32> to vector<1x8x128xf32>
    %148 = vector.shape_cast %143 : vector<1x128xf32> to vector<1x1x128xf32>
    %149 = vector.broadcast %148 : vector<1x1x128xf32> to vector<1x8x128xf32>
    %150 = arith.mulf %147, %149 : vector<1x8x128xf32>
    %151 = vector.shape_cast %150 : vector<1x8x128xf32> to vector<8x128xf32>
    %c4_48 = arith.constant 4 : index
    %c0_49 = arith.constant 0 : index
    %c0_50 = arith.constant 0 : index
    %152 = vector.load %arg2[%c4_48, %c0_49, %c0_50] : memref<9x128x128xbf16, #tpu.memory_space<vmem>>, vector<1x128x128xbf16>
    %153 = vector.shape_cast %152 : vector<1x128x128xbf16> to vector<128x128xbf16>
    %154 = arith.truncf %151 : vector<8x128xf32> to vector<8x128xbf16>
    %cst_51 = arith.constant dense<0.000000e+00> : vector<8x128xf32>
    %155 = tpu.matmul %154, %153, %cst_51 {dimension_numbers = #tpu.dot_dimension_numbers<[1], [0], [0], [1], [0, 0, 1, 1], [], []>} : vector<8x128xbf16>, vector<128x128xbf16>, vector<8x128xf32> -> vector<8x128xf32>
    %c5 = arith.constant 5 : index
    %c0_52 = arith.constant 0 : index
    %156 = vector.load %arg3[%c5, %c0_52] : memref<11x128xf32, #tpu.memory_space<vmem>>, vector<1x128xf32>
    %157 = vector.broadcast %156 : vector<1x128xf32> to vector<8x128xf32>
    %158 = arith.addf %155, %157 : vector<8x128xf32>
    %cst_53 = arith.constant 5.000000e-01 : f32
    %159 = vector.broadcast %cst_53 : f32 to vector<8x128xf32>
    %160 = arith.mulf %159, %158 : vector<8x128xf32>
    %161 = math.tanh %160 : vector<8x128xf32>
    %cst_54 = arith.constant 1.000000e+00 : f32
    %162 = vector.broadcast %cst_54 : f32 to vector<8x128xf32>
    %163 = arith.addf %161, %162 : vector<8x128xf32>
    %cst_55 = arith.constant 5.000000e-01 : f32
    %164 = vector.broadcast %cst_55 : f32 to vector<8x128xf32>
    %165 = arith.mulf %164, %163 : vector<8x128xf32>
    %166 = arith.mulf %158, %165 : vector<8x128xf32>
    %167 = vector.shape_cast %166 : vector<8x128xf32> to vector<1x8x128xf32>
    %c1_56 = arith.constant 1 : index
    %c0_57 = arith.constant 0 : index
    %c0_58 = arith.constant 0 : index
    %168 = vector.load %arg4[%c1_56, %c0_57, %c0_58] : memref<2x9x128xf32, #tpu.memory_space<vmem>>, vector<1x9x128xf32>
    %169 = vector.shape_cast %168 : vector<1x9x128xf32> to vector<9x128xf32>
    %cst_59 = arith.constant 0.000000e+00 : f32
    %170 = vector.broadcast %cst_59 : f32 to vector<1x8x128xf32>
    %171 = tpu.concatenate %170, %167, %170 in 1 : vector<1x8x128xf32>, vector<1x8x128xf32>, vector<1x8x128xf32> -> vector<1x24x128xf32>
    %172 = tpu.iota {dimensions = array<i32: 1>} : vector<1x8x128xi32>
    %c1_i32 = arith.constant 1 : i32
    %173 = vector.broadcast %c1_i32 : i32 to vector<1x8x128xi32>
    %174 = arith.andi %172, %173 : vector<1x8x128xi32>
    %c0_i32_60 = arith.constant 0 : i32
    %175 = vector.broadcast %c0_i32_60 : i32 to vector<1x8x128xi32>
    %176 = arith.cmpi ne, %174, %175 : vector<1x8x128xi32>
    %177 = arith.extui %176 : vector<1x8x128xi1> to vector<1x8x128xi32>
    %178 = arith.sitofp %177 : vector<1x8x128xi32> to vector<1x8x128xf32>
    %c1_i32_61 = arith.constant 1 : i32
    %179 = vector.broadcast %c1_i32_61 : i32 to vector<1x8x128xi32>
    %180 = arith.cmpi ne, %174, %179 : vector<1x8x128xi32>
    %181 = arith.extui %180 : vector<1x8x128xi1> to vector<1x8x128xi32>
    %182 = arith.sitofp %181 : vector<1x8x128xi32> to vector<1x8x128xf32>
    %183 = vector.extract_strided_slice %171 {offsets = [0, 5, 0], sizes = [1, 8, 128], strides = [1, 1, 1]} : vector<1x24x128xf32> to vector<1x8x128xf32>
    %184 = vector.extract_strided_slice %169 {offsets = [0, 0], sizes = [1, 128], strides = [1, 1]} : vector<9x128xf32> to vector<1x128xf32>
    %185 = vector.shape_cast %184 : vector<1x128xf32> to vector<1x1x128xf32>
    %186 = vector.broadcast %185 : vector<1x1x128xf32> to vector<1x8x128xf32>
    %187 = arith.mulf %183, %186 : vector<1x8x128xf32>
    %188 = vector.extract_strided_slice %171 {offsets = [0, 7, 0], sizes = [1, 8, 128], strides = [1, 1, 1]} : vector<1x24x128xf32> to vector<1x8x128xf32>
    %189 = vector.extract_strided_slice %169 {offsets = [3, 0], sizes = [1, 128], strides = [1, 1]} : vector<9x128xf32> to vector<1x128xf32>
    %190 = vector.shape_cast %189 : vector<1x128xf32> to vector<1x1x128xf32>
    %191 = vector.broadcast %190 : vector<1x1x128xf32> to vector<1x8x128xf32>
    %192 = arith.mulf %188, %191 : vector<1x8x128xf32>
    %193 = arith.addf %187, %192 : vector<1x8x128xf32>
    %194 = vector.extract_strided_slice %171 {offsets = [0, 9, 0], sizes = [1, 8, 128], strides = [1, 1, 1]} : vector<1x24x128xf32> to vector<1x8x128xf32>
    %195 = vector.extract_strided_slice %169 {offsets = [6, 0], sizes = [1, 128], strides = [1, 1]} : vector<9x128xf32> to vector<1x128xf32>
    %196 = vector.shape_cast %195 : vector<1x128xf32> to vector<1x1x128xf32>
    %197 = vector.broadcast %196 : vector<1x1x128xf32> to vector<1x8x128xf32>
    %198 = arith.mulf %194, %197 : vector<1x8x128xf32>
    %199 = arith.addf %193, %198 : vector<1x8x128xf32>
    %200 = vector.extract_strided_slice %171 {offsets = [0, 6, 0], sizes = [1, 8, 128], strides = [1, 1, 1]} : vector<1x24x128xf32> to vector<1x8x128xf32>
    %201 = vector.extract_strided_slice %169 {offsets = [1, 0], sizes = [1, 128], strides = [1, 1]} : vector<9x128xf32> to vector<1x128xf32>
    %202 = vector.shape_cast %201 : vector<1x128xf32> to vector<1x1x128xf32>
    %203 = vector.broadcast %202 : vector<1x1x128xf32> to vector<1x8x128xf32>
    %204 = arith.mulf %200, %203 : vector<1x8x128xf32>
    %205 = vector.extract_strided_slice %171 {offsets = [0, 8, 0], sizes = [1, 8, 128], strides = [1, 1, 1]} : vector<1x24x128xf32> to vector<1x8x128xf32>
    %206 = vector.extract_strided_slice %169 {offsets = [4, 0], sizes = [1, 128], strides = [1, 1]} : vector<9x128xf32> to vector<1x128xf32>
    %207 = vector.shape_cast %206 : vector<1x128xf32> to vector<1x1x128xf32>
    %208 = vector.broadcast %207 : vector<1x1x128xf32> to vector<1x8x128xf32>
    %209 = arith.mulf %205, %208 : vector<1x8x128xf32>
    %210 = arith.addf %204, %209 : vector<1x8x128xf32>
    %211 = vector.extract_strided_slice %171 {offsets = [0, 10, 0], sizes = [1, 8, 128], strides = [1, 1, 1]} : vector<1x24x128xf32> to vector<1x8x128xf32>
    %212 = vector.extract_strided_slice %169 {offsets = [7, 0], sizes = [1, 128], strides = [1, 1]} : vector<9x128xf32> to vector<1x128xf32>
    %213 = vector.shape_cast %212 : vector<1x128xf32> to vector<1x1x128xf32>
    %214 = vector.broadcast %213 : vector<1x1x128xf32> to vector<1x8x128xf32>
    %215 = arith.mulf %211, %214 : vector<1x8x128xf32>
    %216 = arith.addf %210, %215 : vector<1x8x128xf32>
    %217 = vector.extract_strided_slice %171 {offsets = [0, 7, 0], sizes = [1, 8, 128], strides = [1, 1, 1]} : vector<1x24x128xf32> to vector<1x8x128xf32>
    %218 = vector.extract_strided_slice %169 {offsets = [2, 0], sizes = [1, 128], strides = [1, 1]} : vector<9x128xf32> to vector<1x128xf32>
    %219 = vector.shape_cast %218 : vector<1x128xf32> to vector<1x1x128xf32>
    %220 = vector.broadcast %219 : vector<1x1x128xf32> to vector<1x8x128xf32>
    %221 = arith.mulf %217, %220 : vector<1x8x128xf32>
    %222 = vector.extract_strided_slice %171 {offsets = [0, 9, 0], sizes = [1, 8, 128], strides = [1, 1, 1]} : vector<1x24x128xf32> to vector<1x8x128xf32>
    %223 = vector.extract_strided_slice %169 {offsets = [5, 0], sizes = [1, 128], strides = [1, 1]} : vector<9x128xf32> to vector<1x128xf32>
    %224 = vector.shape_cast %223 : vector<1x128xf32> to vector<1x1x128xf32>
    %225 = vector.broadcast %224 : vector<1x1x128xf32> to vector<1x8x128xf32>
    %226 = arith.mulf %222, %225 : vector<1x8x128xf32>
    %227 = arith.addf %221, %226 : vector<1x8x128xf32>
    %228 = vector.extract_strided_slice %171 {offsets = [0, 11, 0], sizes = [1, 8, 128], strides = [1, 1, 1]} : vector<1x24x128xf32> to vector<1x8x128xf32>
    %229 = vector.extract_strided_slice %169 {offsets = [8, 0], sizes = [1, 128], strides = [1, 1]} : vector<9x128xf32> to vector<1x128xf32>
    %230 = vector.shape_cast %229 : vector<1x128xf32> to vector<1x1x128xf32>
    %231 = vector.broadcast %230 : vector<1x1x128xf32> to vector<1x8x128xf32>
    %232 = arith.mulf %228, %231 : vector<1x8x128xf32>
    %233 = arith.addf %227, %232 : vector<1x8x128xf32>
    %234 = arith.mulf %199, %178 : vector<1x8x128xf32>
    %235 = arith.addf %234, %216 : vector<1x8x128xf32>
    %236 = arith.mulf %233, %182 : vector<1x8x128xf32>
    %237 = arith.addf %235, %236 : vector<1x8x128xf32>
    %c6 = arith.constant 6 : index
    %c0_62 = arith.constant 0 : index
    %238 = vector.load %arg3[%c6, %c0_62] : memref<11x128xf32, #tpu.memory_space<vmem>>, vector<1x128xf32>
    %239 = vector.shape_cast %238 : vector<1x128xf32> to vector<1x1x128xf32>
    %240 = vector.broadcast %239 : vector<1x1x128xf32> to vector<1x8x128xf32>
    %241 = arith.addf %237, %240 : vector<1x8x128xf32>
    %cst_63 = arith.constant 5.000000e-01 : f32
    %242 = vector.broadcast %cst_63 : f32 to vector<1x8x128xf32>
    %243 = arith.mulf %242, %241 : vector<1x8x128xf32>
    %244 = math.tanh %243 : vector<1x8x128xf32>
    %cst_64 = arith.constant 1.000000e+00 : f32
    %245 = vector.broadcast %cst_64 : f32 to vector<1x8x128xf32>
    %246 = arith.addf %244, %245 : vector<1x8x128xf32>
    %cst_65 = arith.constant 5.000000e-01 : f32
    %247 = vector.broadcast %cst_65 : f32 to vector<1x8x128xf32>
    %248 = arith.mulf %247, %246 : vector<1x8x128xf32>
    %249 = arith.mulf %241, %248 : vector<1x8x128xf32>
    %cst_66 = arith.constant dense<0.000000e+00> : vector<1x128xf32>
    %250 = vector.multi_reduction <add>, %249, %cst_66 [1] : vector<1x8x128xf32> to vector<1x128xf32>
    %cst_67 = arith.constant 1.250000e-01 : f32
    %251 = vector.broadcast %cst_67 : f32 to vector<1x128xf32>
    %252 = arith.mulf %250, %251 : vector<1x128xf32>
    %c5_68 = arith.constant 5 : index
    %c0_69 = arith.constant 0 : index
    %c0_70 = arith.constant 0 : index
    %253 = vector.load %arg2[%c5_68, %c0_69, %c0_70] : memref<9x128x128xbf16, #tpu.memory_space<vmem>>, vector<1x128x128xbf16>
    %254 = vector.shape_cast %253 : vector<1x128x128xbf16> to vector<128x128xbf16>
    %255 = arith.truncf %252 : vector<1x128xf32> to vector<1x128xbf16>
    %cst_71 = arith.constant dense<0.000000e+00> : vector<1x128xf32>
    %256 = tpu.matmul %255, %254, %cst_71 {dimension_numbers = #tpu.dot_dimension_numbers<[1], [0], [0], [1], [0, 0, 1, 1], [], []>} : vector<1x128xbf16>, vector<128x128xbf16>, vector<1x128xf32> -> vector<1x128xf32>
    %c7 = arith.constant 7 : index
    %c0_72 = arith.constant 0 : index
    %257 = vector.load %arg3[%c7, %c0_72] : memref<11x128xf32, #tpu.memory_space<vmem>>, vector<1x128xf32>
    %258 = arith.addf %256, %257 : vector<1x128xf32>
    %cst_73 = arith.constant 5.000000e-01 : f32
    %259 = vector.broadcast %cst_73 : f32 to vector<1x128xf32>
    %260 = arith.mulf %259, %258 : vector<1x128xf32>
    %261 = math.tanh %260 : vector<1x128xf32>
    %cst_74 = arith.constant 1.000000e+00 : f32
    %262 = vector.broadcast %cst_74 : f32 to vector<1x128xf32>
    %263 = arith.addf %261, %262 : vector<1x128xf32>
    %cst_75 = arith.constant 5.000000e-01 : f32
    %264 = vector.broadcast %cst_75 : f32 to vector<1x128xf32>
    %265 = arith.mulf %264, %263 : vector<1x128xf32>
    %266 = arith.mulf %258, %265 : vector<1x128xf32>
    %c6_76 = arith.constant 6 : index
    %c0_77 = arith.constant 0 : index
    %c0_78 = arith.constant 0 : index
    %267 = vector.load %arg2[%c6_76, %c0_77, %c0_78] : memref<9x128x128xbf16, #tpu.memory_space<vmem>>, vector<1x128x128xbf16>
    %268 = vector.shape_cast %267 : vector<1x128x128xbf16> to vector<128x128xbf16>
    %269 = arith.truncf %266 : vector<1x128xf32> to vector<1x128xbf16>
    %cst_79 = arith.constant dense<0.000000e+00> : vector<1x128xf32>
    %270 = tpu.matmul %269, %268, %cst_79 {dimension_numbers = #tpu.dot_dimension_numbers<[1], [0], [0], [1], [0, 0, 1, 1], [], []>} : vector<1x128xbf16>, vector<128x128xbf16>, vector<1x128xf32> -> vector<1x128xf32>
    %c8 = arith.constant 8 : index
    %c0_80 = arith.constant 0 : index
    %271 = vector.load %arg3[%c8, %c0_80] : memref<11x128xf32, #tpu.memory_space<vmem>>, vector<1x128xf32>
    %272 = arith.addf %270, %271 : vector<1x128xf32>
    %cst_81 = arith.constant 5.000000e-01 : f32
    %273 = vector.broadcast %cst_81 : f32 to vector<1x128xf32>
    %274 = arith.mulf %273, %272 : vector<1x128xf32>
    %275 = math.tanh %274 : vector<1x128xf32>
    %cst_82 = arith.constant 1.000000e+00 : f32
    %276 = vector.broadcast %cst_82 : f32 to vector<1x128xf32>
    %277 = arith.addf %275, %276 : vector<1x128xf32>
    %cst_83 = arith.constant 5.000000e-01 : f32
    %278 = vector.broadcast %cst_83 : f32 to vector<1x128xf32>
    %279 = arith.mulf %278, %277 : vector<1x128xf32>
    %280 = vector.shape_cast %279 : vector<1x128xf32> to vector<1x1x128xf32>
    %281 = vector.broadcast %280 : vector<1x1x128xf32> to vector<1x8x128xf32>
    %282 = arith.mulf %249, %281 : vector<1x8x128xf32>
    %283 = vector.shape_cast %282 : vector<1x8x128xf32> to vector<8x128xf32>
    %c7_84 = arith.constant 7 : index
    %c0_85 = arith.constant 0 : index
    %c0_86 = arith.constant 0 : index
    %284 = vector.load %arg2[%c7_84, %c0_85, %c0_86] : memref<9x128x128xbf16, #tpu.memory_space<vmem>>, vector<1x128x128xbf16>
    %285 = vector.shape_cast %284 : vector<1x128x128xbf16> to vector<128x128xbf16>
    %286 = arith.truncf %283 : vector<8x128xf32> to vector<8x128xbf16>
    %cst_87 = arith.constant dense<0.000000e+00> : vector<8x128xf32>
    %287 = tpu.matmul %286, %285, %cst_87 {dimension_numbers = #tpu.dot_dimension_numbers<[1], [0], [0], [1], [0, 0, 1, 1], [], []>} : vector<8x128xbf16>, vector<128x128xbf16>, vector<8x128xf32> -> vector<8x128xf32>
    %c9 = arith.constant 9 : index
    %c0_88 = arith.constant 0 : index
    %288 = vector.load %arg3[%c9, %c0_88] : memref<11x128xf32, #tpu.memory_space<vmem>>, vector<1x128xf32>
    %289 = vector.broadcast %288 : vector<1x128xf32> to vector<8x128xf32>
    %290 = arith.addf %287, %289 : vector<8x128xf32>
    %cst_89 = arith.constant 5.000000e-01 : f32
    %291 = vector.broadcast %cst_89 : f32 to vector<8x128xf32>
    %292 = arith.mulf %291, %290 : vector<8x128xf32>
    %293 = math.tanh %292 : vector<8x128xf32>
    %cst_90 = arith.constant 1.000000e+00 : f32
    %294 = vector.broadcast %cst_90 : f32 to vector<8x128xf32>
    %295 = arith.addf %293, %294 : vector<8x128xf32>
    %cst_91 = arith.constant 5.000000e-01 : f32
    %296 = vector.broadcast %cst_91 : f32 to vector<8x128xf32>
    %297 = arith.mulf %296, %295 : vector<8x128xf32>
    %298 = arith.mulf %290, %297 : vector<8x128xf32>
    %c8_92 = arith.constant 8 : index
    %c0_93 = arith.constant 0 : index
    %c0_94 = arith.constant 0 : index
    %299 = vector.load %arg2[%c8_92, %c0_93, %c0_94] : memref<9x128x128xbf16, #tpu.memory_space<vmem>>, vector<1x128x128xbf16>
    %300 = vector.shape_cast %299 : vector<1x128x128xbf16> to vector<128x128xbf16>
    %301 = arith.truncf %298 : vector<8x128xf32> to vector<8x128xbf16>
    %cst_95 = arith.constant dense<0.000000e+00> : vector<8x128xf32>
    %302 = tpu.matmul %301, %300, %cst_95 {dimension_numbers = #tpu.dot_dimension_numbers<[1], [0], [0], [1], [0, 0, 1, 1], [], []>} : vector<8x128xbf16>, vector<128x128xbf16>, vector<8x128xf32> -> vector<8x128xf32>
    %c10 = arith.constant 10 : index
    %c0_96 = arith.constant 0 : index
    %303 = vector.load %arg3[%c10, %c0_96] : memref<11x128xf32, #tpu.memory_space<vmem>>, vector<1x128xf32>
    %304 = vector.broadcast %303 : vector<1x128xf32> to vector<8x128xf32>
    %305 = arith.addf %302, %304 : vector<8x128xf32>
    %306 = vector.shape_cast %305 : vector<8x128xf32> to vector<1x8x128xf32>
    %307 = vector.extract_strided_slice %306 {offsets = [0, 0, 0], sizes = [1, 8, 96], strides = [1, 1, 1]} : vector<1x8x128xf32> to vector<1x8x96xf32>
    %c0_97 = arith.constant 0 : index
    %c0_98 = arith.constant 0 : index
    %c0_99 = arith.constant 0 : index
    %308 = vector.load %arg6[%c0_97, %c0_98, %c0_99] : memref<1x8x96xf32, #tpu.memory_space<vmem>>, vector<1x8x96xf32>
    tpu.vector_store %arg6[%c0_97, %c0_98, %c0_99], %307 {strides = array<i32>} : memref<1x8x96xf32, #tpu.memory_space<vmem>>, vector<1x8x96xf32>,
    return
  }
  func.func @transform_0(%arg0: i32) -> (i32, i32, i32) {
    %c0_i32 = arith.constant 0 : i32
    %c0_i32_0 = arith.constant 0 : i32
    %c0_i32_1 = arith.constant 0 : i32
    return %arg0, %c0_i32, %c0_i32_0 : i32, i32, i32
  }
  func.func @transform_1(%arg0: i32) -> (i32, i32, i32) {
    %c0_i32 = arith.constant 0 : i32
    %c0_i32_0 = arith.constant 0 : i32
    %c0_i32_1 = arith.constant 0 : i32
    %c0_i32_2 = arith.constant 0 : i32
    return %c0_i32, %c0_i32_0, %c0_i32_1 : i32, i32, i32
  }
  func.func @transform_2(%arg0: i32) -> (i32, i32) {
    %c0_i32 = arith.constant 0 : i32
    %c0_i32_0 = arith.constant 0 : i32
    %c0_i32_1 = arith.constant 0 : i32
    return %c0_i32, %c0_i32_0 : i32, i32
  }
  func.func @transform_3(%arg0: i32) -> (i32, i32, i32) {
    %c0_i32 = arith.constant 0 : i32
    %c0_i32_0 = arith.constant 0 : i32
    %c0_i32_1 = arith.constant 0 : i32
    %c0_i32_2 = arith.constant 0 : i32
    return %c0_i32, %c0_i32_0, %c0_i32_1 : i32, i32, i32
  }
  func.func @transform_4(%arg0: i32) -> (i32, i32) {
    %c0_i32 = arith.constant 0 : i32
    %c0_i32_0 = arith.constant 0 : i32
    %c0_i32_1 = arith.constant 0 : i32
    return %c0_i32, %c0_i32_0 : i32, i32
  }
  func.func @transform_5(%arg0: i32) -> (i32, i32, i32) {
    %c0_i32 = arith.constant 0 : i32
    %c0_i32_0 = arith.constant 0 : i32
    %c0_i32_1 = arith.constant 0 : i32
    return %arg0, %c0_i32, %c0_i32_0 : i32, i32, i32
  }
}

</mosaic_0001>

<llo_original>
// kernel: efficientnet_encoder_forward.1
$region0: #{efficientnet_encoder_forward.1}
  #allocation0 [shape = 'u32[]', space=smem, size = 0x4, offset = 0x4, fixed_abs, tag = 'smem constant byte address 0x4 - core index']
  #allocation1 [shape = 'u32[144,128]{1,0:T(1,128)}', space=vmem, size = 0x12000, scoped, tag = 'internal scratch']
  %s0 = inlined_call_operand.vmem [shape: bf16[2,32,128], index: 0, kind: input, shape index: {}]
  %s1 = inlined_call_operand.vmem [shape: bf16[9,128,128], index: 1, kind: input, shape index: {}]
  %s2 = inlined_call_operand.vmem [shape: f32[11,128], index: 2, kind: input, shape index: {}]
  %s3 = inlined_call_operand.vmem [shape: f32[2,9,128], index: 3, kind: input, shape index: {}]
  %s4 = inlined_call_operand.vmem [shape: f32[8,32], index: 4, kind: input, shape index: {}]
  %s5 = inlined_call_operand.hbm [shape: f32[2,8,96], index: 5, kind: output, shape index: {}]
  %s6 = sld [smem:[#allocation0]]
  $region53: #{efficientnet_encoder_forward.1} parent=0
    _
  %s8 = ssub.s32 1, %s6
  %s9 = scalar_select 0, %s8, %s6
  $region1: #{efficientnet_encoder_forward.1} parent=0
    #allocation2 [shape = 'u8[8192]{0}', space=vmem, size = 0x2000, scoped, tag = 'output window, operand 0']
    #allocation3 [shape = 's32[2]{0}', space=sflag, size = 0x8, scoped, tag = 'scoped memory for efficientnet_encoder_forward.1']
    %10 = vsyncpa [#allocation3], 0
    %s11 = scalar_lea.sflag [#allocation3], 1
    %12 = vsyncpa %s11, 0
    loop: start=0, step=1, limit=4
    $region2: #{efficientnet_encoder_forward.1} parent=1 // loop_pre_header
      _
    $region3: #{efficientnet_encoder_forward.1} parent=1 // loop_header
      %s14 = sphi 0, %s18
      %p15 = scmp.ge.s32.totalorder %s14, 4
      %s24 = sphi 0, %s26
      %s27 = sphi 0, %s24
      %s28 = sphi 0, %s27
      %s44 = sphi 0, %s28
      %s48 = sphi 0, %s48
      %s50 = sphi 0, %s48
      %s51 = sphi 0, %s50
      %s65 = sphi 0, %s51
      %s69 = sphi 0, %s69
      %s71 = sphi 0, %s69
      %s72 = sphi 0, %s71
      %s86 = sphi 0, %s72
      %s90 = sphi 0, %s90
      %s92 = sphi 0, %s90
      %s93 = sphi 0, %s92
      %s107 = sphi 0, %s93
      %s111 = sphi 0, %s111
      %s113 = sphi 0, %s111
      %s114 = sphi 0, %s113
      %s128 = sphi 0, %s114
      %s134 = sphi 0, %s136
      %s137 = sphi 0, %s134
      %s138 = sphi 0, %s137
      %s154 = sphi 0, %s138
    $region4: #{efficientnet_encoder_forward.1} parent=1 // loop_header_branch
      %17 = sbr.rel (%p15) target = $region8
    $region5: #{efficientnet_encoder_forward.1} parent=1 // loop_body
      %s19 = ssub.s32 %s14, 1
      %s20 = ssub.s32 %s14, 2
      %s21 = sadd.s32 %s14, 1
      %s22 = ssub.s32 %s14, %s21
      %p23 = scmp.eq.s32.totalorder %s22, 0
      %s25 = sadd.s32 %s24, 1
      %s26 = scalar_select %p23, %s24, %s25
      %p29 = pneg %p23
      %p30 = scmp.eq.s32.totalorder %s14, 1
      %p31 = por %p29, %p30
      %p32 = scmp.ne.s32.totalorder %s24, %s27
      %p33 = scmp.eq.s32.totalorder %s14, 0
      %p34 = por %p32, %p33
      %p35 = scmp.ne.s32.totalorder %s24, %s27
      %p36 = scmp.eq.s32.totalorder %s19, 1
      %p37 = por %p35, %p36
      %p38 = scmp.ne.s32.totalorder %s27, %s28
      %p39 = scmp.eq.s32.totalorder %s19, 0
      %p40 = por %p38, %p39
      %p41 = scmp.ne.s32.totalorder %s27, %s28
      %p42 = scmp.eq.s32.totalorder %s20, 1
      %p43 = por %p41, %p42
      %p45 = scmp.ne.s32.totalorder %s28, %s44
      %p46 = scmp.eq.s32.totalorder %s20, 0
      %p47 = por %p45, %p46
      %s49 = sadd.s32 %s48, 1
      %p52 = scmp.eq.s32.totalorder %s14, 1
      %p53 = scmp.ne.s32.totalorder %s48, %s50
      %p54 = scmp.eq.s32.totalorder %s14, 0
      %p55 = por %p53, %p54
      %p56 = scmp.ne.s32.totalorder %s48, %s50
      %p57 = scmp.eq.s32.totalorder %s19, 1
      %p58 = por %p56, %p57
      %p59 = scmp.ne.s32.totalorder %s50, %s51
      %p60 = scmp.eq.s32.totalorder %s19, 0
      %p61 = por %p59, %p60
      %p62 = scmp.ne.s32.totalorder %s50, %s51
      %p63 = scmp.eq.s32.totalorder %s20, 1
      %p64 = por %p62, %p63
      %p66 = scmp.ne.s32.totalorder %s51, %s65
      %p67 = scmp.eq.s32.totalorder %s20, 0
      %p68 = por %p66, %p67
      %s70 = sadd.s32 %s69, 1
      %p73 = scmp.eq.s32.totalorder %s14, 1
      %p74 = scmp.ne.s32.totalorder %s69, %s71
      %p75 = scmp.eq.s32.totalorder %s14, 0
      %p76 = por %p74, %p75
      %p77 = scmp.ne.s32.totalorder %s69, %s71
      %p78 = scmp.eq.s32.totalorder %s19, 1
      %p79 = por %p77, %p78
      %p80 = scmp.ne.s32.totalorder %s71, %s72
      %p81 = scmp.eq.s32.totalorder %s19, 0
      %p82 = por %p80, %p81
      %p83 = scmp.ne.s32.totalorder %s71, %s72
      %p84 = scmp.eq.s32.totalorder %s20, 1
      %p85 = por %p83, %p84
      %p87 = scmp.ne.s32.totalorder %s72, %s86
      %p88 = scmp.eq.s32.totalorder %s20, 0
      %p89 = por %p87, %p88
      %s91 = sadd.s32 %s90, 1
      %p94 = scmp.eq.s32.totalorder %s14, 1
      %p95 = scmp.ne.s32.totalorder %s90, %s92
      %p96 = scmp.eq.s32.totalorder %s14, 0
      %p97 = por %p95, %p96
      %p98 = scmp.ne.s32.totalorder %s90, %s92
      %p99 = scmp.eq.s32.totalorder %s19, 1
      %p100 = por %p98, %p99
      %p101 = scmp.ne.s32.totalorder %s92, %s93
      %p102 = scmp.eq.s32.totalorder %s19, 0
      %p103 = por %p101, %p102
      %p104 = scmp.ne.s32.totalorder %s92, %s93
      %p105 = scmp.eq.s32.totalorder %s20, 1
      %p106 = por %p104, %p105
      %p108 = scmp.ne.s32.totalorder %s93, %s107
      %p109 = scmp.eq.s32.totalorder %s20, 0
      %p110 = por %p108, %p109
      %s112 = sadd.s32 %s111, 1
      %p115 = scmp.eq.s32.totalorder %s14, 1
      %p116 = scmp.ne.s32.totalorder %s111, %s113
      %p117 = scmp.eq.s32.totalorder %s14, 0
      %p118 = por %p116, %p117
      %p119 = scmp.ne.s32.totalorder %s111, %s113
      %p120 = scmp.eq.s32.totalorder %s19, 1
      %p121 = por %p119, %p120
      %p122 = scmp.ne.s32.totalorder %s113, %s114
      %p123 = scmp.eq.s32.totalorder %s19, 0
      %p124 = por %p122, %p123
      %p125 = scmp.ne.s32.totalorder %s113, %s114
      %p126 = scmp.eq.s32.totalorder %s20, 1
      %p127 = por %p125, %p126
      %p129 = scmp.ne.s32.totalorder %s114, %s128
      %p130 = scmp.eq.s32.totalorder %s20, 0
      %p131 = por %p129, %p130
      %s132 = ssub.s32 %s14, %s21
      %p133 = scmp.eq.s32.totalorder %s132, 0
      %s135 = sadd.s32 %s134, 1
      %s136 = scalar_select %p133, %s134, %s135
      %p139 = pneg %p133
      %p140 = scmp.eq.s32.totalorder %s14, 1
      %p141 = por %p139, %p140
      %p142 = scmp.ne.s32.totalorder %s134, %s137
      %p143 = scmp.eq.s32.totalorder %s14, 0
      %p144 = por %p142, %p143
      %p145 = scmp.ne.s32.totalorder %s134, %s137
      %p146 = scmp.eq.s32.totalorder %s19, 1
      %p147 = por %p145, %p146
      %p148 = scmp.ne.s32.totalorder %s137, %s138
      %p149 = scmp.eq.s32.totalorder %s19, 0
      %p150 = por %p148, %p149
      %p151 = scmp.ne.s32.totalorder %s137, %s138
      %p152 = scmp.eq.s32.totalorder %s20, 1
      %p153 = por %p151, %p152
      %p155 = scmp.ne.s32.totalorder %s138, %s154
      %p156 = scmp.eq.s32.totalorder %s20, 0
      %p157 = por %p155, %p156
      %p158 = scmp.le.s32.totalorder 1, %s14
      %p159 = scmp.lt.s32.totalorder %s14, 3
      %p160 = pnand %p158, %p159
      %p161 = pneg %p160
      // Predicated region
      $region9: #{efficientnet_encoder_forward.1} parent=5 // pred_check
        _
      $region10: #{efficientnet_encoder_forward.1} parent=5 // pred_check_branch
        %163 = sbr.rel (%p160) target = $region12
      $region11: #{efficientnet_encoder_forward.1} parent=5 // pred_region
        %s164 = ssub.s32 %s14, 1
        // Predicated region
        $region13: #{efficientnet_encoder_forward.1} parent=11 // pred_check
          %p165 = pneg %p61
        $region14: #{efficientnet_encoder_forward.1} parent=11 // pred_check_branch
          %167 = sbr.rel (%p165) target = $region16
        $region15: #{efficientnet_encoder_forward.1} parent=11 // pred_region
          _
        $region16: #{efficientnet_encoder_forward.1} parent=11 // pred_fallthru
          _
        // Predicated region
        $region17: #{efficientnet_encoder_forward.1} parent=11 // pred_check
          %p168 = pneg %p82
        $region18: #{efficientnet_encoder_forward.1} parent=11 // pred_check_branch
          %170 = sbr.rel (%p168) target = $region20
        $region19: #{efficientnet_encoder_forward.1} parent=11 // pred_region
          _
        $region20: #{efficientnet_encoder_forward.1} parent=11 // pred_fallthru
          _
        // Predicated region
        $region21: #{efficientnet_encoder_forward.1} parent=11 // pred_check
          %p171 = pneg %p103
        $region22: #{efficientnet_encoder_forward.1} parent=11 // pred_check_branch
          %173 = sbr.rel (%p171) target = $region24
        $region23: #{efficientnet_encoder_forward.1} parent=11 // pred_region
          _
        $region24: #{efficientnet_encoder_forward.1} parent=11 // pred_fallthru
          _
        // Predicated region
        $region25: #{efficientnet_encoder_forward.1} parent=11 // pred_check
          %p174 = pneg %p124
        $region26: #{efficientnet_encoder_forward.1} parent=11 // pred_check_branch
          %176 = sbr.rel (%p174) target = $region28
        $region27: #{efficientnet_encoder_forward.1} parent=11 // pred_region
          _
        $region28: #{efficientnet_encoder_forward.1} parent=11 // pred_fallthru
          _
      $region12: #{efficientnet_encoder_forward.1} parent=5 // pred_fallthru
        _
      %p177 = scmp.lt.s32.totalorder %s14, 2
      // Predicated region
      $region29: #{efficientnet_encoder_forward.1} parent=5 // pred_check
        %p178 = pneg %p177
      $region30: #{efficientnet_encoder_forward.1} parent=5 // pred_check_branch
        %180 = sbr.rel (%p178) target = $region32
      $region31: #{efficientnet_encoder_forward.1} parent=5 // pred_region
        // Predicated region
        $region33: #{efficientnet_encoder_forward.1} parent=31 // pred_check
          %p181 = pneg %p34
        $region34: #{efficientnet_encoder_forward.1} parent=31 // pred_check_branch
          %183 = sbr.rel (%p181) target = $region36
        $region35: #{efficientnet_encoder_forward.1} parent=31 // pred_region
          %p184 = scmp.lt.s32.totalorder %s14, 1
          %s185 = scalar_select %p184, %s14, 1
          %s186 = smul.addr %s185, 4
          %s187 = smul.addr %s186, 4
          %s188 = scalar_lea.vmem %s0, %s187
        $region36: #{efficientnet_encoder_forward.1} parent=31 // pred_fallthru
          _
      $region32: #{efficientnet_encoder_forward.1} parent=5 // pred_fallthru
        _
      %p189 = scmp.le.s32.totalorder 1, %s14
      %p190 = scmp.lt.s32.totalorder %s14, 3
      %p191 = pnand %p189, %p190
      %p192 = pneg %p191
      // Predicated region
      $region37: #{efficientnet_encoder_forward.1} parent=5 // pred_check
        _
      $region38: #{efficientnet_encoder_forward.1} parent=5 // pred_check_branch
        %194 = sbr.rel (%p191) target = $region40
      $region39: #{efficientnet_encoder_forward.1} parent=5 // pred_region
        %s195 = ssub.s32 %s14, 1
        %p196 = scmp.lt.s32.totalorder %s19, 1
        %s197 = scalar_select %p196, %s19, 1
        %s198 = smul.addr %s197, 4
        %s199 = smul.addr %s198, 4
        %s200 = scalar_lea.vmem %s0, %s199
        %p201 = pneg %p40
        %p202 = pneg %p37
        %p203 = pneg %p61
        %p204 = pneg %p58
        %p205 = pneg %p82
        %p206 = pneg %p79
        %p207 = pneg %p103
        %p208 = pneg %p100
        %p209 = pneg %p124
        %p210 = pneg %p121
        %p211 = pneg %p150
        %p212 = pneg %p147
        %s213 = sand.u32 %s137, 1
        %s214 = scalar_lea.sflag [#allocation3], %s213
        %s215 = sand.u32 %s137, 1
        %s216 = smul.addr %s215, 8
        %s217 = scalar_lea.vmem [#allocation2], %s216
        %p218 = scmp.lt.s32.totalorder %s19, 1
        %s219 = scalar_select %p218, %s19, 1
        %s220 = smul.addr %s219, 4
        %s221 = smul.addr %s220, 4
        %s222 = scalar_lea.vmem %s0, %s221
        %v224 = vld [vmem:[%s222] sm:$0xf]
        %v225 = vld [vmem:[%s222 + $0x4] sm:$0xf]
        %v226 = vld [vmem:[%s222 + $0x8] sm:$0xf]
        %v227 = vld [vmem:[%s222 + $0xc] sm:$0xf]
        %v228 = vld [vmem:[%s1] sm:$0xf]
        %v229 = vld [vmem:[%s1 + $0x4] sm:$0xf]
        %v230 = vld [vmem:[%s1 + $0x8] sm:$0xf]
        %v231 = vld [vmem:[%s1 + $0xc] sm:$0xf]
        %v232 = vld [vmem:[%s1 + $0x10] sm:$0xf]
        %v233 = vld [vmem:[%s1 + $0x14] sm:$0xf]
        %v234 = vld [vmem:[%s1 + $0x18] sm:$0xf]
        %v235 = vld [vmem:[%s1 + $0x1c] sm:$0xf]
        %v236 = vld [vmem:[%s1 + $0x20] sm:$0xf]
        %v237 = vld [vmem:[%s1 + $0x24] sm:$0xf]
        %v238 = vld [vmem:[%s1 + $0x28] sm:$0xf]
        %v239 = vld [vmem:[%s1 + $0x2c] sm:$0xf]
        %v240 = vld [vmem:[%s1 + $0x30] sm:$0xf]
        %v241 = vld [vmem:[%s1 + $0x34] sm:$0xf]
        %v242 = vld [vmem:[%s1 + $0x38] sm:$0xf]
        %v243 = vld [vmem:[%s1 + $0x3c] sm:$0xf]
        %v244 = vld [vmem:[%s2] sm:$0x1]
        %v245 = vlaneseq
        %v246 = vshrl.u32 %v245, 7
        %v247 = vsub.s32 0, %v246
        %v248 = vrot.slane %v244, %v247
        %v253 = vunpack.c.l.b16 %v224
        %v254 = vunpack.c.l.b16 %v225
        %v255 = vunpack.c.l.b16 %v226
        %v256 = vunpack.c.l.b16 %v227
        %v257 = vpack.c.b16 %v254, %v253
        %v258 = vpack.c.b16 %v256, %v255
        %v277 = vunpack.c.l.b16 %v228
        %v278 = vunpack.c.l.b16 %v229
        %v279 = vunpack.c.l.b16 %v230
        %v280 = vunpack.c.l.b16 %v231
        %v281 = vunpack.c.l.b16 %v232
        %v282 = vunpack.c.l.b16 %v233
        %v283 = vunpack.c.l.b16 %v234
        %v284 = vunpack.c.l.b16 %v235
        %v285 = vunpack.c.l.b16 %v236
        %v286 = vunpack.c.l.b16 %v237
        %v287 = vunpack.c.l.b16 %v238
        %v288 = vunpack.c.l.b16 %v239
        %v289 = vunpack.c.l.b16 %v240
        %v290 = vunpack.c.l.b16 %v241
        %v291 = vunpack.c.l.b16 %v242
        %v292 = vunpack.c.l.b16 %v243
        %v293 = vpack.c.b16 %v278, %v277
        %v294 = vpack.c.b16 %v280, %v279
        %v295 = vpack.c.b16 %v282, %v281
        %v296 = vpack.c.b16 %v284, %v283
        %v297 = vpack.c.b16 %v286, %v285
        %v298 = vpack.c.b16 %v288, %v287
        %v299 = vpack.c.b16 %v290, %v289
        %v300 = vpack.c.b16 %v292, %v291
        %309 = vmatprep.subr.bf16.mxu0 0
        %310 = vmatpush1.bf16.msra.mxu0 %v293
        %311 = vmatprep.subr.bf16.mxu0 0
        %312 = vmatpush1.bf16.msra.mxu0 %v294
        %313 = vmatprep.subr.bf16.mxu0 0
        %314 = vmatpush1.bf16.msra.mxu0 %v295
        %315 = vmatprep.subr.bf16.mxu0 0
        %316 = vmatpush1.bf16.msra.mxu0 %v296
        %317 = vmatprep.subr.bf16.mxu0 0
        %318 = vmatpush1.bf16.msra.mxu0 %v297
        %319 = vmatprep.subr.bf16.mxu0 0
        %320 = vmatpush1.bf16.msra.mxu0 %v298
        %321 = vmatprep.subr.bf16.mxu0 0
        %322 = vmatpush1.bf16.msra.mxu0 %v299
        %323 = vmatprep.subr.bf16.mxu0 0
        %324 = vmatpush1.bf16.msra.mxu0 %v300
        %325 = vmatprep.subr.bf16.mxu0 0
        %326 = vmatpush1.bf16.msra.mxu0 0
        %327 = vmatprep.subr.bf16.mxu0 0
        %328 = vmatpush1.bf16.msra.mxu0 0
        %329 = vmatprep.subr.bf16.mxu0 0
        %330 = vmatpush1.bf16.msra.mxu0 0
        %331 = vmatprep.subr.bf16.mxu0 0
        %332 = vmatpush1.bf16.msra.mxu0 0
        %333 = vmatprep.subr.bf16.mxu0 0
        %334 = vmatpush1.bf16.msra.mxu0 0
        %335 = vmatprep.subr.bf16.mxu0 0
        %336 = vmatpush1.bf16.msra.mxu0 0
        %337 = vmatprep.subr.bf16.mxu0 0
        %338 = vmatpush1.bf16.msra.mxu0 0
        %339 = vmatprep.subr.bf16.mxu0 0
        %340 = vmatpush1.bf16.msra.mxu0 0
        %341 = vmatprep.mubr.bf16.mxu0 0
        %342 = vmatmul.mubr.bf16.gmra.mrb[0].mxu0 %v257
        %v343 = vpop.f32.mrb[0].mxu0
        %v344 = vadd.f32 %v248, %v343
        %v345 = vpop.f32.mrb[0].mxu0
        %v346 = vpop.f32.mrb[0].mxu0
        %v347 = vadd.f32 %v248, %v346
        %v348 = vpop.f32.mrb[0].mxu0
        %349 = vmatprep.mubr.bf16.mxu0 0
        %350 = vmatmul.mubr.bf16.gmra.mrb[0].mxu0 %v258
        %v351 = vpop.f32.mrb[0].mxu0
        %v352 = vadd.f32 %v248, %v351
        %v353 = vpop.f32.mrb[0].mxu0
        %v354 = vpop.f32.mrb[0].mxu0
        %v355 = vadd.f32 %v248, %v354
        %v356 = vpop.f32.mrb[0].mxu0
        %357 = vdwg.mxu0
        %v358 = vmul.f32 %v344, 0.5
        %v359 = vmul.f32 %v347, 0.5
        %v360 = vmul.f32 %v352, 0.5
        %v361 = vmul.f32 %v355, 0.5
        %v362 = vtanh.pop %v358
        %v363 = vtanh.pop %v359
        %v364 = vtanh.pop %v360
        %v365 = vtanh.pop %v361
        %v366 = vadd.f32 %v362, 1.0
        %v367 = vadd.f32 %v363, 1.0
        %v368 = vadd.f32 %v364, 1.0
        %v369 = vadd.f32 %v365, 1.0
        %v370 = vmul.f32 %v366, 0.5
        %v371 = vmul.f32 %v367, 0.5
        %v372 = vmul.f32 %v368, 0.5
        %v373 = vmul.f32 %v369, 0.5
        %v374 = vmul.f32 %v344, %v370
        %v375 = vmul.f32 %v347, %v371
        %v376 = vmul.f32 %v352, %v372
        %v377 = vmul.f32 %v355, %v373
        %s378 = scalar_lea.vmem %s1, 64
        %v379 = vld [vmem:[%s378] sm:$0xf]
        %v380 = vld [vmem:[%s378 + $0x4] sm:$0xf]
        %v381 = vld [vmem:[%s378 + $0x8] sm:$0xf]
        %v382 = vld [vmem:[%s378 + $0xc] sm:$0xf]
        %v383 = vld [vmem:[%s378 + $0x10] sm:$0xf]
        %v384 = vld [vmem:[%s378 + $0x14] sm:$0xf]
        %v385 = vld [vmem:[%s378 + $0x18] sm:$0xf]
        %v386 = vld [vmem:[%s378 + $0x1c] sm:$0xf]
        %v387 = vld [vmem:[%s378 + $0x20] sm:$0xf]
        %v388 = vld [vmem:[%s378 + $0x24] sm:$0xf]
        %v389 = vld [vmem:[%s378 + $0x28] sm:$0xf]
        %v390 = vld [vmem:[%s378 + $0x2c] sm:$0xf]
        %v391 = vld [vmem:[%s378 + $0x30] sm:$0xf]
        %v392 = vld [vmem:[%s378 + $0x34] sm:$0xf]
        %v393 = vld [vmem:[%s378 + $0x38] sm:$0xf]
        %v394 = vld [vmem:[%s378 + $0x3c] sm:$0xf]
        %v395 = vpack.c.bf16 %v375, %v374
        %v396 = vpack.c.bf16 %v377, %v376
        %v397 = vld [vmem:[%s2 + $0x1] sm:$0x1]
        %v398 = vlaneseq
        %v399 = vshrl.u32 %v398, 7
        %v400 = vsub.s32 0, %v399
        %v401 = vrot.slane %v397, %v400
        %v418 = vunpack.c.l.b16 %v379
        %v419 = vunpack.c.l.b16 %v380
        %v420 = vunpack.c.l.b16 %v381
        %v421 = vunpack.c.l.b16 %v382
        %v422 = vunpack.c.l.b16 %v383
        %v423 = vunpack.c.l.b16 %v384
        %v424 = vunpack.c.l.b16 %v385
        %v425 = vunpack.c.l.b16 %v386
        %v426 = vunpack.c.l.b16 %v387
        %v427 = vunpack.c.l.b16 %v388
        %v428 = vunpack.c.l.b16 %v389
        %v429 = vunpack.c.l.b16 %v390
        %v430 = vunpack.c.l.b16 %v391
        %v431 = vunpack.c.l.b16 %v392
        %v432 = vunpack.c.l.b16 %v393
        %v433 = vunpack.c.l.b16 %v394
        %v434 = vpack.c.b16 %v419, %v418
        %v435 = vpack.c.b16 %v421, %v420
        %v436 = vpack.c.b16 %v423, %v422
        %v437 = vpack.c.b16 %v425, %v424
        %v438 = vpack.c.b16 %v427, %v426
        %v439 = vpack.c.b16 %v429, %v428
        %v440 = vpack.c.b16 %v431, %v430
        %v441 = vpack.c.b16 %v433, %v432
        %450 = vmatprep.subr.bf16.mxu0 0
        %451 = vmatpush1.bf16.msra.mxu0 %v434
        %452 = vmatprep.subr.bf16.mxu0 0
        %453 = vmatpush1.bf16.msra.mxu0 %v435
        %454 = vmatprep.subr.bf16.mxu0 0
        %455 = vmatpush1.bf16.msra.mxu0 %v436
        %456 = vmatprep.subr.bf16.mxu0 0
        %457 = vmatpush1.bf16.msra.mxu0 %v437
        %458 = vmatprep.subr.bf16.mxu0 0
        %459 = vmatpush1.bf16.msra.mxu0 %v438
        %460 = vmatprep.subr.bf16.mxu0 0
        %461 = vmatpush1.bf16.msra.mxu0 %v439
        %462 = vmatprep.subr.bf16.mxu0 0
        %463 = vmatpush1.bf16.msra.mxu0 %v440
        %464 = vmatprep.subr.bf16.mxu0 0
        %465 = vmatpush1.bf16.msra.mxu0 %v441
        %466 = vmatprep.subr.bf16.mxu0 0
        %467 = vmatpush1.bf16.msra.mxu0 0
        %468 = vmatprep.subr.bf16.mxu0 0
        %469 = vmatpush1.bf16.msra.mxu0 0
        %470 = vmatprep.subr.bf16.mxu0 0
        %471 = vmatpush1.bf16.msra.mxu0 0
        %472 = vmatprep.subr.bf16.mxu0 0
        %473 = vmatpush1.bf16.msra.mxu0 0
        %474 = vmatprep.subr.bf16.mxu0 0
        %475 = vmatpush1.bf16.msra.mxu0 0
        %476 = vmatprep.subr.bf16.mxu0 0
        %477 = vmatpush1.bf16.msra.mxu0 0
        %478 = vmatprep.subr.bf16.mxu0 0
        %479 = vmatpush1.bf16.msra.mxu0 0
        %480 = vmatprep.subr.bf16.mxu0 0
        %481 = vmatpush1.bf16.msra.mxu0 0
        %482 = vmatprep.mubr.bf16.mxu0 0
        %483 = vmatmul.mubr.bf16.gmra.mrb[0].mxu0 %v395
        %v484 = vpop.f32.mrb[0].mxu0
        %v485 = vadd.f32 %v401, %v484
        %v486 = vpop.f32.mrb[0].mxu0
        %v487 = vpop.f32.mrb[0].mxu0
        %v488 = vadd.f32 %v401, %v487
        %v489 = vpop.f32.mrb[0].mxu0
        %490 = vmatprep.mubr.bf16.mxu0 0
        %491 = vmatmul.mubr.bf16.gmra.mrb[0].mxu0 %v396
        %v492 = vpop.f32.mrb[0].mxu0
        %v493 = vadd.f32 %v401, %v492
        %v494 = vpop.f32.mrb[0].mxu0
        %v495 = vpop.f32.mrb[0].mxu0
        %v496 = vadd.f32 %v401, %v495
        %v497 = vpop.f32.mrb[0].mxu0
        %498 = vdwg.mxu0
        %v499 = vmul.f32 %v485, 0.5
        %v500 = vmul.f32 %v488, 0.5
        %v501 = vmul.f32 %v493, 0.5
        %v502 = vmul.f32 %v496, 0.5
        %v503 = vtanh.pop %v499
        %v504 = vtanh.pop %v500
        %v505 = vtanh.pop %v501
        %v506 = vtanh.pop %v502
        %v507 = vadd.f32 %v503, 1.0
        %v508 = vadd.f32 %v504, 1.0
        %v509 = vadd.f32 %v505, 1.0
        %v510 = vadd.f32 %v506, 1.0
        %v511 = vmul.f32 %v507, 0.5
        %v512 = vmul.f32 %v508, 0.5
        %v513 = vmul.f32 %v509, 0.5
        %v514 = vmul.f32 %v510, 0.5
        %v515 = vmul.f32 %v485, %v511
        %v516 = vmul.f32 %v488, %v512
        %v517 = vmul.f32 %v493, %v513
        %v518 = vmul.f32 %v496, %v514
        %v519 = vld [vmem:[%s3] sm:$0xff]
        %v520 = vld [vmem:[%s3 + $0x8] sm:$0x1]
        %v521 = vlaneseq
        %v522 = vshrl.u32 %v521, 7
        %v523 = vadd.s32 %v522, 8
        %v524 = vadd.s32 %v522, 16
        %v525 = vadd.s32 %v522, 24
        %v526 = vand.u32 %v522, 3
        %v527 = vand.u32 %v523, 3
        %v528 = vand.u32 %v524, 3
        %v529 = vand.u32 %v525, 3
        %vm530 = vcmp.ne.s32.totalorder %v526, 0
        %vm531 = vcmp.ne.s32.totalorder %v527, 0
        %vm532 = vcmp.ne.s32.totalorder %v528, 0
        %vm533 = vcmp.ne.s32.totalorder %v529, 0
        %v534 = vsel %vm530, 1, 0
        %v535 = vsel %vm531, 1, 0
        %v536 = vsel %vm532, 1, 0
        %v537 = vsel %vm533, 1, 0
        %v538 = vcvt.s32.f32 %v534
        %v539 = vcvt.s32.f32 %v535
        %v540 = vcvt.s32.f32 %v536
        %v541 = vcvt.s32.f32 %v537
        %vm542 = vcmp.ne.s32.totalorder %v526, 3
        %vm543 = vcmp.ne.s32.totalorder %v527, 3
        %vm544 = vcmp.ne.s32.totalorder %v528, 3
        %vm545 = vcmp.ne.s32.totalorder %v529, 3
        %v546 = vsel %vm542, 1, 0
        %v547 = vsel %vm543, 1, 0
        %v548 = vsel %vm544, 1, 0
        %v549 = vsel %vm545, 1, 0
        %v550 = vcvt.s32.f32 %v546
        %v551 = vcvt.s32.f32 %v547
        %v552 = vcvt.s32.f32 %v548
        %v553 = vcvt.s32.f32 %v549
        %v554 = vlaneseq
        %v555 = vshrl.u32 %v554, 7
        %v556 = vsub.s32 0, %v555
        %v557 = vrot.slane %v519, %v556
        %v558 = vmul.f32 %v557, 0.0
        %v559 = vmul.f32 %v515, %v557
        %v560 = vmul.f32 %v516, %v557
        %v561 = vmul.f32 %v517, %v557
        %v562 = vmul.f32 %v518, %v557
        %v563 = vlaneseq
        %v564 = vshrl.u32 %v563, 7
        %v565 = vsub.s32 3, %v564
        %v566 = vrot.slane %v519, %v565
        %v567 = vmul.f32 %v566, 0.0
        %v568 = vmul.f32 %v515, %v566
        %v569 = vmul.f32 %v516, %v566
        %v570 = vmul.f32 %v517, %v566
        %v571 = vmul.f32 %v518, %v566
        %vm577 = vcmask 1043456
        %v578 = vrot.slane %v567, 4
        %v579 = vrot.slane %v568, 4
        %v580 = vsel %vm577, %v578, %v579
        %v581 = vrot.slane %v569, 4
        %v582 = vsel %vm577, %v579, %v581
        %v583 = vrot.slane %v570, 4
        %v584 = vsel %vm577, %v581, %v583
        %v585 = vrot.slane %v571, 4
        %v586 = vsel %vm577, %v583, %v585
        %v592 = vadd.f32 %v558, %v580
        %v593 = vadd.f32 %v559, %v582
        %v594 = vadd.f32 %v560, %v584
        %v595 = vadd.f32 %v561, %v586
        %v596 = vadd.f32 %v562, %v585
        %v597 = vlaneseq
        %v598 = vshrl.u32 %v597, 7
        %v599 = vsub.s32 6, %v598
        %v600 = vrot.slane %v519, %v599
        %v601 = vmul.f32 %v515, %v600
        %v602 = vmul.f32 %v516, %v600
        %v603 = vmul.f32 %v517, %v600
        %v604 = vmul.f32 %v518, %v600
        %v605 = vmul.f32 %v600, 0.0
        %v606 = vadd.f32 %v592, %v601
        %v607 = vadd.f32 %v593, %v602
        %v608 = vadd.f32 %v594, %v603
        %v609 = vadd.f32 %v595, %v604
        %v610 = vadd.f32 %v596, %v605
        %v611 = vlaneseq
        %v612 = vshrl.u32 %v611, 7
        %v613 = vsub.s32 1, %v612
        %v614 = vrot.slane %v519, %v613
        %v615 = vmul.f32 %v614, 0.0
        %v616 = vmul.f32 %v515, %v614
        %v617 = vmul.f32 %v516, %v614
        %v618 = vmul.f32 %v517, %v614
        %v619 = vmul.f32 %v518, %v614
        %v620 = vlaneseq
        %v621 = vshrl.u32 %v620, 7
        %v622 = vsub.s32 4, %v621
        %v623 = vrot.slane %v519, %v622
        %v624 = vmul.f32 %v515, %v623
        %v625 = vmul.f32 %v516, %v623
        %v626 = vmul.f32 %v517, %v623
        %v627 = vmul.f32 %v518, %v623
        %v632 = vrot.slane %v624, 4
        %v633 = vrot.slane %v625, 4
        %v634 = vsel %vm577, %v632, %v633
        %v635 = vrot.slane %v626, 4
        %v636 = vsel %vm577, %v633, %v635
        %v637 = vrot.slane %v627, 4
        %v638 = vsel %vm577, %v635, %v637
        %v644 = vadd.f32 %v615, %v632
        %v645 = vadd.f32 %v616, %v634
        %v646 = vadd.f32 %v617, %v636
        %v647 = vadd.f32 %v618, %v638
        %v648 = vadd.f32 %v619, %v637
        %v649 = vlaneseq
        %v650 = vshrl.u32 %v649, 7
        %v651 = vsub.s32 7, %v650
        %v652 = vrot.slane %v519, %v651
        %v653 = vmul.f32 %v515, %v652
        %v654 = vmul.f32 %v516, %v652
        %v655 = vmul.f32 %v517, %v652
        %v656 = vmul.f32 %v518, %v652
        %v657 = vmul.f32 %v652, 0.0
        %v658 = vadd.f32 %v644, %v653
        %v659 = vadd.f32 %v645, %v654
        %v660 = vadd.f32 %v646, %v655
        %v661 = vadd.f32 %v647, %v656
        %v662 = vadd.f32 %v648, %v657
        %v663 = vlaneseq
        %v664 = vshrl.u32 %v663, 7
        %v665 = vsub.s32 2, %v664
        %v666 = vrot.slane %v519, %v665
        %v667 = vmul.f32 %v666, 0.0
        %v668 = vmul.f32 %v515, %v666
        %v669 = vmul.f32 %v516, %v666
        %v670 = vmul.f32 %v517, %v666
        %v671 = vmul.f32 %v518, %v666
        %v672 = vlaneseq
        %v673 = vshrl.u32 %v672, 7
        %v674 = vsub.s32 5, %v673
        %v675 = vrot.slane %v519, %v674
        %v676 = vmul.f32 %v515, %v675
        %v677 = vmul.f32 %v516, %v675
        %v678 = vmul.f32 %v517, %v675
        %v679 = vmul.f32 %v518, %v675
        %v680 = vmul.f32 %v675, 0.0
        %v686 = vrot.slane %v676, 4
        %v687 = vrot.slane %v677, 4
        %v688 = vsel %vm577, %v686, %v687
        %v689 = vrot.slane %v678, 4
        %v690 = vsel %vm577, %v687, %v689
        %v691 = vrot.slane %v679, 4
        %v692 = vsel %vm577, %v689, %v691
        %v693 = vrot.slane %v680, 4
        %v694 = vsel %vm577, %v691, %v693
        %v700 = vadd.f32 %v667, %v686
        %v701 = vadd.f32 %v668, %v688
        %v702 = vadd.f32 %v669, %v690
        %v703 = vadd.f32 %v670, %v692
        %v704 = vadd.f32 %v671, %v694
        %v705 = vlaneseq
        %v706 = vshrl.u32 %v705, 7
        %v707 = vsub.s32 0, %v706
        %v708 = vrot.slane %v520, %v707
        %v709 = vmul.f32 %v515, %v708
        %v710 = vmul.f32 %v516, %v708
        %v711 = vmul.f32 %v517, %v708
        %v712 = vmul.f32 %v518, %v708
        %v713 = vmul.f32 %v708, 0.0
        %v714 = vadd.f32 %v700, %v709
        %v715 = vadd.f32 %v701, %v710
        %v716 = vadd.f32 %v702, %v711
        %v717 = vadd.f32 %v703, %v712
        %v718 = vadd.f32 %v704, %v713
        %vm723 = vcmask 1042432
        %v724 = vrot.slane %v538, 5
        %v725 = vrot.slane %v539, 5
        %v726 = vsel %vm723, %v724, %v725
        %v727 = vrot.slane %v540, 5
        %v728 = vsel %vm723, %v725, %v727
        %v729 = vrot.slane %v541, 5
        %v730 = vsel %vm723, %v727, %v729
        %v736 = vmul.f32 %v606, %v724
        %v737 = vmul.f32 %v607, %v726
        %v738 = vmul.f32 %v608, %v728
        %v739 = vmul.f32 %v609, %v730
        %v740 = vmul.f32 %v610, %v729
        %vm746 = vcmask 1046528
        %v747 = vrot.slane %v658, 1
        %v748 = vrot.slane %v659, 1
        %v749 = vsel %vm746, %v747, %v748
        %v750 = vrot.slane %v660, 1
        %v751 = vsel %vm746, %v748, %v750
        %v752 = vrot.slane %v661, 1
        %v753 = vsel %vm746, %v750, %v752
        %v754 = vrot.slane %v662, 1
        %v755 = vsel %vm746, %v752, %v754
        %v761 = vadd.f32 %v736, %v749
        %v762 = vadd.f32 %v737, %v751
        %v763 = vadd.f32 %v738, %v753
        %v764 = vadd.f32 %v739, %v755
        %v765 = vadd.f32 %v740, %v754
        %vm770 = vcmask 1044480
        %v771 = vrot.slane %v550, 3
        %v772 = vrot.slane %v551, 3
        %v773 = vsel %vm770, %v771, %v772
        %v774 = vrot.slane %v552, 3
        %v775 = vsel %vm770, %v772, %v774
        %v776 = vrot.slane %v553, 3
        %v777 = vsel %vm770, %v774, %v776
        %v783 = vmul.f32 %v714, %v771
        %v784 = vmul.f32 %v715, %v773
        %v785 = vmul.f32 %v716, %v775
        %v786 = vmul.f32 %v717, %v777
        %v787 = vmul.f32 %v718, %v776
        %vm793 = vcmask 1045504
        %v794 = vrot.slane %v783, 2
        %v795 = vrot.slane %v784, 2
        %v796 = vsel %vm793, %v794, %v795
        %v797 = vrot.slane %v785, 2
        %v798 = vsel %vm793, %v795, %v797
        %v799 = vrot.slane %v786, 2
        %v800 = vsel %vm793, %v797, %v799
        %v801 = vrot.slane %v787, 2
        %v802 = vsel %vm793, %v799, %v801
        %v808 = vadd.f32 %v761, %v796
        %v809 = vadd.f32 %v762, %v798
        %v810 = vadd.f32 %v763, %v800
        %v811 = vadd.f32 %v764, %v802
        %v812 = vadd.f32 %v765, %v801
        %v813 = vld [vmem:[%s2 + $0x2] sm:$0x1]
        %v814 = vlaneseq
        %v815 = vshrl.u32 %v814, 7
        %v816 = vsub.s32 0, %v815
        %v817 = vrot.slane %v813, %v816
        %v818 = vadd.f32 %v808, %v817
        %v819 = vadd.f32 %v809, %v817
        %v820 = vadd.f32 %v810, %v817
        %v821 = vadd.f32 %v811, %v817
        %v822 = vadd.f32 %v812, %v817
        %v823 = vmul.f32 %v818, 0.5
        %v824 = vmul.f32 %v819, 0.5
        %v825 = vmul.f32 %v820, 0.5
        %v826 = vmul.f32 %v821, 0.5
        %v827 = vmul.f32 %v822, 0.5
        %v828 = vtanh.pop %v823
        %v829 = vtanh.pop %v824
        %v830 = vtanh.pop %v825
        %v831 = vtanh.pop %v826
        %v832 = vtanh.pop %v827
        %v833 = vadd.f32 %v828, 1.0
        %v834 = vadd.f32 %v829, 1.0
        %v835 = vadd.f32 %v830, 1.0
        %v836 = vadd.f32 %v831, 1.0
        %v837 = vadd.f32 %v832, 1.0
        %v838 = vmul.f32 %v833, 0.5
        %v839 = vmul.f32 %v834, 0.5
        %v840 = vmul.f32 %v835, 0.5
        %v841 = vmul.f32 %v836, 0.5
        %v842 = vmul.f32 %v837, 0.5
        %v843 = vmul.f32 %v818, %v838
        %v844 = vmul.f32 %v819, %v839
        %v845 = vmul.f32 %v820, %v840
        %v846 = vmul.f32 %v821, %v841
        %v847 = vmul.f32 %v822, %v842
        %v853 = vrot.slane %v843, 3
        %v854 = vrot.slane %v844, 3
        %v855 = vsel %vm770, %v853, %v854
        %v856 = vrot.slane %v845, 3
        %v857 = vsel %vm770, %v854, %v856
        %v858 = vrot.slane %v846, 3
        %v859 = vsel %vm770, %v856, %v858
        %v860 = vrot.slane %v847, 3
        %v861 = vsel %vm770, %v858, %v860
        %v866 = vadd.f32 %v855, %v857
        %v867 = vadd.f32 %v866, %v859
        %v868 = vadd.f32 %v867, %v861
        %v869 = vrot.slane %v868, 4
        %v870 = vadd.f32 %v868, %v869
        %v871 = vrot.slane %v870, 2
        %v872 = vadd.f32 %v870, %v871
        %v873 = vrot.slane %v872, 1
        %v874 = vadd.f32 %v872, %v873
        %v875 = vmul.f32 %v874, 0.03125
        %s876 = scalar_lea.vmem %s1, 128
        %v877 = vld [vmem:[%s876] sm:$0xf]
        %v878 = vld [vmem:[%s876 + $0x4] sm:$0xf]
        %v879 = vld [vmem:[%s876 + $0x8] sm:$0xf]
        %v880 = vld [vmem:[%s876 + $0xc] sm:$0xf]
        %v881 = vld [vmem:[%s876 + $0x10] sm:$0xf]
        %v882 = vld [vmem:[%s876 + $0x14] sm:$0xf]
        %v883 = vld [vmem:[%s876 + $0x18] sm:$0xf]
        %v884 = vld [vmem:[%s876 + $0x1c] sm:$0xf]
        %v885 = vld [vmem:[%s876 + $0x20] sm:$0xf]
        %v886 = vld [vmem:[%s876 + $0x24] sm:$0xf]
        %v887 = vld [vmem:[%s876 + $0x28] sm:$0xf]
        %v888 = vld [vmem:[%s876 + $0x2c] sm:$0xf]
        %v889 = vld [vmem:[%s876 + $0x30] sm:$0xf]
        %v890 = vld [vmem:[%s876 + $0x34] sm:$0xf]
        %v891 = vld [vmem:[%s876 + $0x38] sm:$0xf]
        %v892 = vld [vmem:[%s876 + $0x3c] sm:$0xf]
        %v893 = vpack.c.bf16 %v875, %v875
        %v894 = vld [vmem:[%s2 + $0x3] sm:$0x1]
        %v911 = vunpack.c.l.b16 %v877
        %v912 = vunpack.c.l.b16 %v878
        %v913 = vunpack.c.l.b16 %v879
        %v914 = vunpack.c.l.b16 %v880
        %v915 = vunpack.c.l.b16 %v881
        %v916 = vunpack.c.l.b16 %v882
        %v917 = vunpack.c.l.b16 %v883
        %v918 = vunpack.c.l.b16 %v884
        %v919 = vunpack.c.l.b16 %v885
        %v920 = vunpack.c.l.b16 %v886
        %v921 = vunpack.c.l.b16 %v887
        %v922 = vunpack.c.l.b16 %v888
        %v923 = vunpack.c.l.b16 %v889
        %v924 = vunpack.c.l.b16 %v890
        %v925 = vunpack.c.l.b16 %v891
        %v926 = vunpack.c.l.b16 %v892
        %v927 = vpack.c.b16 %v912, %v911
        %v928 = vpack.c.b16 %v914, %v913
        %v929 = vpack.c.b16 %v916, %v915
        %v930 = vpack.c.b16 %v918, %v917
        %v931 = vpack.c.b16 %v920, %v919
        %v932 = vpack.c.b16 %v922, %v921
        %v933 = vpack.c.b16 %v924, %v923
        %v934 = vpack.c.b16 %v926, %v925
        %943 = vmatprep.subr.bf16.mxu0 0
        %944 = vmatpush1.bf16.msra.mxu0 %v927
        %945 = vmatprep.subr.bf16.mxu0 0
        %946 = vmatpush1.bf16.msra.mxu0 %v928
        %947 = vmatprep.subr.bf16.mxu0 0
        %948 = vmatpush1.bf16.msra.mxu0 %v929
        %949 = vmatprep.subr.bf16.mxu0 0
        %950 = vmatpush1.bf16.msra.mxu0 %v930
        %951 = vmatprep.subr.bf16.mxu0 0
        %952 = vmatpush1.bf16.msra.mxu0 %v931
        %953 = vmatprep.subr.bf16.mxu0 0
        %954 = vmatpush1.bf16.msra.mxu0 %v932
        %955 = vmatprep.subr.bf16.mxu0 0
        %956 = vmatpush1.bf16.msra.mxu0 %v933
        %957 = vmatprep.subr.bf16.mxu0 0
        %958 = vmatpush1.bf16.msra.mxu0 %v934
        %959 = vmatprep.subr.bf16.mxu0 0
        %960 = vmatpush1.bf16.msra.mxu0 0
        %961 = vmatprep.subr.bf16.mxu0 0
        %962 = vmatpush1.bf16.msra.mxu0 0
        %963 = vmatprep.subr.bf16.mxu0 0
        %964 = vmatpush1.bf16.msra.mxu0 0
        %965 = vmatprep.subr.bf16.mxu0 0
        %966 = vmatpush1.bf16.msra.mxu0 0
        %967 = vmatprep.subr.bf16.mxu0 0
        %968 = vmatpush1.bf16.msra.mxu0 0
        %969 = vmatprep.subr.bf16.mxu0 0
        %970 = vmatpush1.bf16.msra.mxu0 0
        %971 = vmatprep.subr.bf16.mxu0 0
        %972 = vmatpush1.bf16.msra.mxu0 0
        %973 = vmatprep.subr.bf16.mxu0 0
        %974 = vmatpush1.bf16.msra.mxu0 0
        %975 = vmatprep.mubr.bf16.mxu0 0
        %976 = vmatmul.mubr.bf16.gmra.mrb[0].mxu0 %v893
        %v977 = vpop.f32.mrb[0].mxu0
        %v978 = vadd.f32 %v894, %v977
        %v979 = vpop.f32.mrb[0].mxu0
        %v980 = vpop.f32.mrb[0].mxu0
        %v981 = vpop.f32.mrb[0].mxu0
        %982 = vdwg.mxu0
        %v983 = vmul.f32 %v978, 0.5
        %v984 = vtanh.pop %v983
        %v985 = vadd.f32 %v984, 1.0
        %v986 = vmul.f32 %v985, 0.5
        %v987 = vmul.f32 %v978, %v986
        %s988 = scalar_lea.vmem %s1, 192
        %v989 = vld [vmem:[%s988] sm:$0xf]
        %v990 = vld [vmem:[%s988 + $0x4] sm:$0xf]
        %v991 = vld [vmem:[%s988 + $0x8] sm:$0xf]
        %v992 = vld [vmem:[%s988 + $0xc] sm:$0xf]
        %v993 = vld [vmem:[%s988 + $0x10] sm:$0xf]
        %v994 = vld [vmem:[%s988 + $0x14] sm:$0xf]
        %v995 = vld [vmem:[%s988 + $0x18] sm:$0xf]
        %v996 = vld [vmem:[%s988 + $0x1c] sm:$0xf]
        %v997 = vld [vmem:[%s988 + $0x20] sm:$0xf]
        %v998 = vld [vmem:[%s988 + $0x24] sm:$0xf]
        %v999 = vld [vmem:[%s988 + $0x28] sm:$0xf]
        %v1000 = vld [vmem:[%s988 + $0x2c] sm:$0xf]
        %v1001 = vld [vmem:[%s988 + $0x30] sm:$0xf]
        %v1002 = vld [vmem:[%s988 + $0x34] sm:$0xf]
        %v1003 = vld [vmem:[%s988 + $0x38] sm:$0xf]
        %v1004 = vld [vmem:[%s988 + $0x3c] sm:$0xf]
        %v1005 = vpack.c.bf16 %v987, %v987
        %v1006 = vld [vmem:[%s2 + $0x4] sm:$0x1]
        %v1023 = vunpack.c.l.b16 %v989
        %v1024 = vunpack.c.l.b16 %v990
        %v1025 = vunpack.c.l.b16 %v991
        %v1026 = vunpack.c.l.b16 %v992
        %v1027 = vunpack.c.l.b16 %v993
        %v1028 = vunpack.c.l.b16 %v994
        %v1029 = vunpack.c.l.b16 %v995
        %v1030 = vunpack.c.l.b16 %v996
        %v1031 = vunpack.c.l.b16 %v997
        %v1032 = vunpack.c.l.b16 %v998
        %v1033 = vunpack.c.l.b16 %v999
        %v1034 = vunpack.c.l.b16 %v1000
        %v1035 = vunpack.c.l.b16 %v1001
        %v1036 = vunpack.c.l.b16 %v1002
        %v1037 = vunpack.c.l.b16 %v1003
        %v1038 = vunpack.c.l.b16 %v1004
        %v1039 = vpack.c.b16 %v1024, %v1023
        %v1040 = vpack.c.b16 %v1026, %v1025
        %v1041 = vpack.c.b16 %v1028, %v1027
        %v1042 = vpack.c.b16 %v1030, %v1029
        %v1043 = vpack.c.b16 %v1032, %v1031
        %v1044 = vpack.c.b16 %v1034, %v1033
        %v1045 = vpack.c.b16 %v1036, %v1035
        %v1046 = vpack.c.b16 %v1038, %v1037
        %1055 = vmatprep.subr.bf16.mxu0 0
        %1056 = vmatpush1.bf16.msra.mxu0 %v1039
        %1057 = vmatprep.subr.bf16.mxu0 0
        %1058 = vmatpush1.bf16.msra.mxu0 %v1040
        %1059 = vmatprep.subr.bf16.mxu0 0
        %1060 = vmatpush1.bf16.msra.mxu0 %v1041
        %1061 = vmatprep.subr.bf16.mxu0 0
        %1062 = vmatpush1.bf16.msra.mxu0 %v1042
        %1063 = vmatprep.subr.bf16.mxu0 0
        %1064 = vmatpush1.bf16.msra.mxu0 %v1043
        %1065 = vmatprep.subr.bf16.mxu0 0
        %1066 = vmatpush1.bf16.msra.mxu0 %v1044
        %1067 = vmatprep.subr.bf16.mxu0 0
        %1068 = vmatpush1.bf16.msra.mxu0 %v1045
        %1069 = vmatprep.subr.bf16.mxu0 0
        %1070 = vmatpush1.bf16.msra.mxu0 %v1046
        %1071 = vmatprep.subr.bf16.mxu0 0
        %1072 = vmatpush1.bf16.msra.mxu0 0
        %1073 = vmatprep.subr.bf16.mxu0 0
        %1074 = vmatpush1.bf16.msra.mxu0 0
        %1075 = vmatprep.subr.bf16.mxu0 0
        %1076 = vmatpush1.bf16.msra.mxu0 0
        %1077 = vmatprep.subr.bf16.mxu0 0
        %1078 = vmatpush1.bf16.msra.mxu0 0
        %1079 = vmatprep.subr.bf16.mxu0 0
        %1080 = vmatpush1.bf16.msra.mxu0 0
        %1081 = vmatprep.subr.bf16.mxu0 0
        %1082 = vmatpush1.bf16.msra.mxu0 0
        %1083 = vmatprep.subr.bf16.mxu0 0
        %1084 = vmatpush1.bf16.msra.mxu0 0
        %1085 = vmatprep.subr.bf16.mxu0 0
        %1086 = vmatpush1.bf16.msra.mxu0 0
        %1087 = vmatprep.mubr.bf16.mxu0 0
        %1088 = vmatmul.mubr.bf16.gmra.mrb[0].mxu0 %v1005
        %v1089 = vpop.f32.mrb[0].mxu0
        %v1090 = vadd.f32 %v1006, %v1089
        %v1091 = vpop.f32.mrb[0].mxu0
        %v1092 = vpop.f32.mrb[0].mxu0
        %v1093 = vpop.f32.mrb[0].mxu0
        %1094 = vdwg.mxu0
        %v1095 = vmul.f32 %v1090, 0.5
        %v1096 = vtanh.pop %v1095
        %v1097 = vadd.f32 %v1096, 1.0
        %v1098 = vmul.f32 %v1097, 0.5
        %v1099 = vld [vmem:[%s4] sm:$0xff]
        %vm1100 = vcmask 261120
        %v1102 = vsel %vm1100, %v1099, 0
        %1104 = vmatprep.subr.mxu0 0.0
        %1105 = vmatpush1.msra.mxu0 %v855
        %1106 = vmatprep.subr.mxu0 0.0
        %1107 = vmatpush1.msra.mxu0 %v857
        %1108 = vmatprep.subr.mxu0 0.0
        %1109 = vmatpush1.msra.mxu0 %v859
        %1110 = vmatprep.subr.mxu0 0.0
        %1111 = vmatpush1.msra.mxu0 %v861
        %1112 = vmatprep.subr.mxu0 0.0
        %1113 = vmatpush1.msra.mxu0 0.0
        %1114 = vmatprep.subr.mxu0 0.0
        %1115 = vmatpush1.msra.mxu0 0.0
        %1116 = vmatprep.subr.mxu0 0.0
        %1117 = vmatpush1.msra.mxu0 0.0
        %1118 = vmatprep.subr.mxu0 0.0
        %1119 = vmatpush1.msra.mxu0 0.0
        %1120 = vmatprep.subr.mxu0 0.0
        %1121 = vmatpush1.msra.mxu0 0.0
        %1122 = vmatprep.subr.mxu0 0.0
        %1123 = vmatpush1.msra.mxu0 0.0
        %1124 = vmatprep.subr.mxu0 0.0
        %1125 = vmatpush1.msra.mxu0 0.0
        %1126 = vmatprep.subr.mxu0 0.0
        %1127 = vmatpush1.msra.mxu0 0.0
        %1128 = vmatprep.subr.mxu0 0.0
        %1129 = vmatpush1.msra.mxu0 0.0
        %1130 = vmatprep.subr.mxu0 0.0
        %1131 = vmatpush1.msra.mxu0 0.0
        %1132 = vmatprep.subr.mxu0 0.0
        %1133 = vmatpush1.msra.mxu0 0.0
        %1134 = vmatprep.subr.mxu0 0.0
        %1135 = vmatpush1.msra.mxu0 0.0
        %1136 = vmatprep.subr.mxu0 0.0
        %1137 = vmatpush1.msra.mxu0 0.0
        %1138 = vmatprep.subr.mxu0 0.0
        %1139 = vmatpush1.msra.mxu0 0.0
        %1140 = vmatprep.subr.mxu0 0.0
        %1141 = vmatpush1.msra.mxu0 0.0
        %1142 = vmatprep.subr.mxu0 0.0
        %1143 = vmatpush1.msra.mxu0 0.0
        %1144 = vmatprep.subr.mxu0 0.0
        %1145 = vmatpush1.msra.mxu0 0.0
        %1146 = vmatprep.subr.mxu0 0.0
        %1147 = vmatpush1.msra.mxu0 0.0
        %1148 = vmatprep.subr.mxu0 0.0
        %1149 = vmatpush1.msra.mxu0 0.0
        %1150 = vmatprep.subr.mxu0 0.0
        %1151 = vmatpush1.msra.mxu0 0.0
        %1152 = vmatprep.subr.mxu0 0.0
        %1153 = vmatpush1.msra.mxu0 0.0
        %1154 = vmatprep.subr.mxu0 0.0
        %1155 = vmatpush1.msra.mxu0 0.0
        %1156 = vmatprep.subr.mxu0 0.0
        %1157 = vmatpush1.msra.mxu0 0.0
        %1158 = vmatprep.subr.mxu0 0.0
        %1159 = vmatpush1.msra.mxu0 0.0
        %1160 = vmatprep.subr.mxu0 0.0
        %1161 = vmatpush1.msra.mxu0 0.0
        %1162 = vmatprep.subr.mxu0 0.0
        %1163 = vmatpush1.msra.mxu0 0.0
        %1164 = vmatprep.subr.mxu0 0.0
        %1165 = vmatpush1.msra.mxu0 0.0
        %1166 = vmatprep.subr.mxu0 0.0
        %1167 = vmatpush1.msra.mxu0 0.0
        %1168 = vmatprep.mubr.f32.mxu0 0.0
        %1169 = vmatmul.mubr.f32.gmra.mrb[0].mxu0 %v1102
        %v1170 = vpop.f32.mrb[0].mxu0
        %v1171 = vadd.f32 0.0, %v1170
        %v1172 = vpop.f32.mrb[0].mxu0
        %1173 = vdwg.mxu0
        %v1174 = vlaneseq
        %v1175 = vshrl.u32 %v1174, 7
        %v1176 = vsub.s32 0, %v1175
        %v1177 = vrot.slane %v1098, %v1176
        %v1178 = vmul.f32 %v1171, %v1177
        %s1179 = scalar_lea.vmem %s1, 256
        %v1180 = vld [vmem:[%s1179] sm:$0xf]
        %v1181 = vld [vmem:[%s1179 + $0x4] sm:$0xf]
        %v1182 = vld [vmem:[%s1179 + $0x8] sm:$0xf]
        %v1183 = vld [vmem:[%s1179 + $0xc] sm:$0xf]
        %v1184 = vld [vmem:[%s1179 + $0x10] sm:$0xf]
        %v1185 = vld [vmem:[%s1179 + $0x14] sm:$0xf]
        %v1186 = vld [vmem:[%s1179 + $0x18] sm:$0xf]
        %v1187 = vld [vmem:[%s1179 + $0x1c] sm:$0xf]
        %v1188 = vld [vmem:[%s1179 + $0x20] sm:$0xf]
        %v1189 = vld [vmem:[%s1179 + $0x24] sm:$0xf]
        %v1190 = vld [vmem:[%s1179 + $0x28] sm:$0xf]
        %v1191 = vld [vmem:[%s1179 + $0x2c] sm:$0xf]
        %v1192 = vld [vmem:[%s1179 + $0x30] sm:$0xf]
        %v1193 = vld [vmem:[%s1179 + $0x34] sm:$0xf]
        %v1194 = vld [vmem:[%s1179 + $0x38] sm:$0xf]
        %v1195 = vld [vmem:[%s1179 + $0x3c] sm:$0xf]
        %v1196 = vpack.c.bf16 %v1178, %v1178
        %v1197 = vld [vmem:[%s2 + $0x5] sm:$0x1]
        %v1198 = vlaneseq
        %v1199 = vshrl.u32 %v1198, 7
        %v1200 = vsub.s32 0, %v1199
        %v1201 = vrot.slane %v1197, %v1200
        %v1218 = vunpack.c.l.b16 %v1180
        %v1219 = vunpack.c.l.b16 %v1181
        %v1220 = vunpack.c.l.b16 %v1182
        %v1221 = vunpack.c.l.b16 %v1183
        %v1222 = vunpack.c.l.b16 %v1184
        %v1223 = vunpack.c.l.b16 %v1185
        %v1224 = vunpack.c.l.b16 %v1186
        %v1225 = vunpack.c.l.b16 %v1187
        %v1226 = vunpack.c.l.b16 %v1188
        %v1227 = vunpack.c.l.b16 %v1189
        %v1228 = vunpack.c.l.b16 %v1190
        %v1229 = vunpack.c.l.b16 %v1191
        %v1230 = vunpack.c.l.b16 %v1192
        %v1231 = vunpack.c.l.b16 %v1193
        %v1232 = vunpack.c.l.b16 %v1194
        %v1233 = vunpack.c.l.b16 %v1195
        %v1234 = vpack.c.b16 %v1219, %v1218
        %v1235 = vpack.c.b16 %v1221, %v1220
        %v1236 = vpack.c.b16 %v1223, %v1222
        %v1237 = vpack.c.b16 %v1225, %v1224
        %v1238 = vpack.c.b16 %v1227, %v1226
        %v1239 = vpack.c.b16 %v1229, %v1228
        %v1240 = vpack.c.b16 %v1231, %v1230
        %v1241 = vpack.c.b16 %v1233, %v1232
        %1250 = vmatprep.subr.bf16.mxu0 0
        %1251 = vmatpush1.bf16.msra.mxu0 %v1234
        %1252 = vmatprep.subr.bf16.mxu0 0
        %1253 = vmatpush1.bf16.msra.mxu0 %v1235
        %1254 = vmatprep.subr.bf16.mxu0 0
        %1255 = vmatpush1.bf16.msra.mxu0 %v1236
        %1256 = vmatprep.subr.bf16.mxu0 0
        %1257 = vmatpush1.bf16.msra.mxu0 %v1237
        %1258 = vmatprep.subr.bf16.mxu0 0
        %1259 = vmatpush1.bf16.msra.mxu0 %v1238
        %1260 = vmatprep.subr.bf16.mxu0 0
        %1261 = vmatpush1.bf16.msra.mxu0 %v1239
        %1262 = vmatprep.subr.bf16.mxu0 0
        %1263 = vmatpush1.bf16.msra.mxu0 %v1240
        %1264 = vmatprep.subr.bf16.mxu0 0
        %1265 = vmatpush1.bf16.msra.mxu0 %v1241
        %1266 = vmatprep.subr.bf16.mxu0 0
        %1267 = vmatpush1.bf16.msra.mxu0 0
        %1268 = vmatprep.subr.bf16.mxu0 0
        %1269 = vmatpush1.bf16.msra.mxu0 0
        %1270 = vmatprep.subr.bf16.mxu0 0
        %1271 = vmatpush1.bf16.msra.mxu0 0
        %1272 = vmatprep.subr.bf16.mxu0 0
        %1273 = vmatpush1.bf16.msra.mxu0 0
        %1274 = vmatprep.subr.bf16.mxu0 0
        %1275 = vmatpush1.bf16.msra.mxu0 0
        %1276 = vmatprep.subr.bf16.mxu0 0
        %1277 = vmatpush1.bf16.msra.mxu0 0
        %1278 = vmatprep.subr.bf16.mxu0 0
        %1279 = vmatpush1.bf16.msra.mxu0 0
        %1280 = vmatprep.subr.bf16.mxu0 0
        %1281 = vmatpush1.bf16.msra.mxu0 0
        %1282 = vmatprep.mubr.bf16.mxu0 0
        %1283 = vmatmul.mubr.bf16.gmra.mrb[0].mxu0 %v1196
        %v1284 = vpop.f32.mrb[0].mxu0
        %v1285 = vadd.f32 %v1201, %v1284
        %v1286 = vpop.f32.mrb[0].mxu0
        %v1287 = vpop.f32.mrb[0].mxu0
        %v1288 = vpop.f32.mrb[0].mxu0
        %1289 = vdwg.mxu0
        %v1290 = vmul.f32 %v1285, 0.5
        %v1291 = vtanh.pop %v1290
        %v1292 = vadd.f32 %v1291, 1.0
        %v1293 = vmul.f32 %v1292, 0.5
        %v1294 = vmul.f32 %v1285, %v1293
        %s1295 = scalar_lea.vmem %s3, 16
        %v1296 = vld [vmem:[%s1295] sm:$0xff]
        %v1297 = vld [vmem:[%s1295 + $0x8] sm:$0x1]
        %v1298 = vand.u32 %v522, 1
        %vm1299 = vcmp.ne.s32.totalorder %v1298, 0
        %v1300 = vsel %vm1299, 1, 0
        %v1301 = vcvt.s32.f32 %v1300
        %vm1302 = vcmp.ne.s32.totalorder %v1298, 1
        %v1303 = vsel %vm1302, 1, 0
        %v1304 = vcvt.s32.f32 %v1303
        %v1305 = vlaneseq
        %v1306 = vshrl.u32 %v1305, 7
        %v1307 = vsub.s32 0, %v1306
        %v1308 = vrot.slane %v1296, %v1307
        %v1309 = vmul.f32 %v1308, 0.0
        %v1310 = vmul.f32 %v1294, %v1308
        %v1311 = vlaneseq
        %v1312 = vshrl.u32 %v1311, 7
        %v1313 = vsub.s32 3, %v1312
        %v1314 = vrot.slane %v1296, %v1313
        %v1315 = vmul.f32 %v1314, 0.0
        %v1316 = vmul.f32 %v1294, %v1314
        %v1319 = vrot.slane %v1315, 2
        %v1320 = vrot.slane %v1316, 2
        %v1321 = vsel %vm793, %v1319, %v1320
        %v1324 = vadd.f32 %v1309, %v1321
        %v1325 = vadd.f32 %v1310, %v1320
        %v1326 = vlaneseq
        %v1327 = vshrl.u32 %v1326, 7
        %v1328 = vsub.s32 6, %v1327
        %v1329 = vrot.slane %v1296, %v1328
        %v1330 = vmul.f32 %v1294, %v1329
        %v1331 = vmul.f32 %v1329, 0.0
        %v1334 = vrot.slane %v1330, 4
        %v1335 = vrot.slane %v1331, 4
        %v1336 = vsel %vm577, %v1334, %v1335
        %v1339 = vadd.f32 %v1324, %v1334
        %v1340 = vadd.f32 %v1325, %v1336
        %v1341 = vlaneseq
        %v1342 = vshrl.u32 %v1341, 7
        %v1343 = vsub.s32 1, %v1342
        %v1344 = vrot.slane %v1296, %v1343
        %v1345 = vmul.f32 %v1344, 0.0
        %v1346 = vmul.f32 %v1294, %v1344
        %v1347 = vlaneseq
        %v1348 = vshrl.u32 %v1347, 7
        %v1349 = vsub.s32 4, %v1348
        %v1350 = vrot.slane %v1296, %v1349
        %v1351 = vmul.f32 %v1294, %v1350
        %v1353 = vrot.slane %v1351, 2
        %v1355 = vadd.f32 %v1345, %v1353
        %v1356 = vadd.f32 %v1346, %v1353
        %v1357 = vlaneseq
        %v1358 = vshrl.u32 %v1357, 7
        %v1359 = vsub.s32 7, %v1358
        %v1360 = vrot.slane %v1296, %v1359
        %v1361 = vmul.f32 %v1294, %v1360
        %v1362 = vmul.f32 %v1360, 0.0
        %v1365 = vrot.slane %v1361, 4
        %v1366 = vrot.slane %v1362, 4
        %v1367 = vsel %vm577, %v1365, %v1366
        %v1370 = vadd.f32 %v1355, %v1365
        %v1371 = vadd.f32 %v1356, %v1367
        %v1372 = vlaneseq
        %v1373 = vshrl.u32 %v1372, 7
        %v1374 = vsub.s32 2, %v1373
        %v1375 = vrot.slane %v1296, %v1374
        %v1376 = vmul.f32 %v1375, 0.0
        %v1377 = vmul.f32 %v1294, %v1375
        %v1378 = vlaneseq
        %v1379 = vshrl.u32 %v1378, 7
        %v1380 = vsub.s32 5, %v1379
        %v1381 = vrot.slane %v1296, %v1380
        %v1382 = vmul.f32 %v1294, %v1381
        %v1383 = vmul.f32 %v1381, 0.0
        %v1386 = vrot.slane %v1382, 2
        %v1387 = vrot.slane %v1383, 2
        %v1388 = vsel %vm793, %v1386, %v1387
        %v1391 = vadd.f32 %v1376, %v1386
        %v1392 = vadd.f32 %v1377, %v1388
        %v1393 = vlaneseq
        %v1394 = vshrl.u32 %v1393, 7
        %v1395 = vsub.s32 0, %v1394
        %v1396 = vrot.slane %v1297, %v1395
        %v1397 = vmul.f32 %v1294, %v1396
        %v1398 = vmul.f32 %v1396, 0.0
        %v1401 = vrot.slane %v1397, 4
        %v1402 = vrot.slane %v1398, 4
        %v1403 = vsel %vm577, %v1401, %v1402
        %v1406 = vadd.f32 %v1391, %v1401
        %v1407 = vadd.f32 %v1392, %v1403
        %v1409 = vrot.slane %v1301, 3
        %v1411 = vmul.f32 %v1339, %v1409
        %v1412 = vmul.f32 %v1340, %v1409
        %v1415 = vrot.slane %v1370, 1
        %v1416 = vrot.slane %v1371, 1
        %v1417 = vsel %vm746, %v1415, %v1416
        %v1420 = vadd.f32 %v1411, %v1417
        %v1421 = vadd.f32 %v1412, %v1416
        %v1423 = vrot.slane %v1304, 1
        %v1425 = vmul.f32 %v1406, %v1423
        %v1426 = vmul.f32 %v1407, %v1423
        %v1429 = vrot.slane %v1425, 2
        %v1430 = vrot.slane %v1426, 2
        %v1431 = vsel %vm793, %v1429, %v1430
        %v1434 = vadd.f32 %v1420, %v1431
        %v1435 = vadd.f32 %v1421, %v1430
        %v1436 = vld [vmem:[%s2 + $0x6] sm:$0x1]
        %v1437 = vlaneseq
        %v1438 = vshrl.u32 %v1437, 7
        %v1439 = vsub.s32 0, %v1438
        %v1440 = vrot.slane %v1436, %v1439
        %v1441 = vadd.f32 %v1434, %v1440
        %v1442 = vadd.f32 %v1435, %v1440
        %v1443 = vmul.f32 %v1441, 0.5
        %v1444 = vmul.f32 %v1442, 0.5
        %v1445 = vtanh.pop %v1443
        %v1446 = vtanh.pop %v1444
        %v1447 = vadd.f32 %v1445, 1.0
        %v1448 = vadd.f32 %v1446, 1.0
        %v1449 = vmul.f32 %v1447, 0.5
        %v1450 = vmul.f32 %v1448, 0.5
        %v1451 = vmul.f32 %v1441, %v1449
        %v1452 = vmul.f32 %v1442, %v1450
        %v1455 = vrot.slane %v1451, 5
        %v1456 = vrot.slane %v1452, 5
        %v1457 = vsel %vm723, %v1455, %v1456
        %v1459 = vrot.slane %v1457, 4
        %v1460 = vadd.f32 %v1457, %v1459
        %v1461 = vrot.slane %v1460, 2
        %v1462 = vadd.f32 %v1460, %v1461
        %v1463 = vrot.slane %v1462, 1
        %v1464 = vadd.f32 %v1462, %v1463
        %v1465 = vmul.f32 %v1464, 0.125
        %s1466 = scalar_lea.vmem %s1, 320
        %v1467 = vld [vmem:[%s1466] sm:$0xf]
        %v1468 = vld [vmem:[%s1466 + $0x4] sm:$0xf]
        %v1469 = vld [vmem:[%s1466 + $0x8] sm:$0xf]
        %v1470 = vld [vmem:[%s1466 + $0xc] sm:$0xf]
        %v1471 = vld [vmem:[%s1466 + $0x10] sm:$0xf]
        %v1472 = vld [vmem:[%s1466 + $0x14] sm:$0xf]
        %v1473 = vld [vmem:[%s1466 + $0x18] sm:$0xf]
        %v1474 = vld [vmem:[%s1466 + $0x1c] sm:$0xf]
        %v1475 = vld [vmem:[%s1466 + $0x20] sm:$0xf]
        %v1476 = vld [vmem:[%s1466 + $0x24] sm:$0xf]
        %v1477 = vld [vmem:[%s1466 + $0x28] sm:$0xf]
        %v1478 = vld [vmem:[%s1466 + $0x2c] sm:$0xf]
        %v1479 = vld [vmem:[%s1466 + $0x30] sm:$0xf]
        %v1480 = vld [vmem:[%s1466 + $0x34] sm:$0xf]
        %v1481 = vld [vmem:[%s1466 + $0x38] sm:$0xf]
        %v1482 = vld [vmem:[%s1466 + $0x3c] sm:$0xf]
        %v1483 = vpack.c.bf16 %v1465, %v1465
        %v1484 = vld [vmem:[%s2 + $0x7] sm:$0x1]
        %v1501 = vunpack.c.l.b16 %v1467
        %v1502 = vunpack.c.l.b16 %v1468
        %v1503 = vunpack.c.l.b16 %v1469
        %v1504 = vunpack.c.l.b16 %v1470
        %v1505 = vunpack.c.l.b16 %v1471
        %v1506 = vunpack.c.l.b16 %v1472
        %v1507 = vunpack.c.l.b16 %v1473
        %v1508 = vunpack.c.l.b16 %v1474
        %v1509 = vunpack.c.l.b16 %v1475
        %v1510 = vunpack.c.l.b16 %v1476
        %v1511 = vunpack.c.l.b16 %v1477
        %v1512 = vunpack.c.l.b16 %v1478
        %v1513 = vunpack.c.l.b16 %v1479
        %v1514 = vunpack.c.l.b16 %v1480
        %v1515 = vunpack.c.l.b16 %v1481
        %v1516 = vunpack.c.l.b16 %v1482
        %v1517 = vpack.c.b16 %v1502, %v1501
        %v1518 = vpack.c.b16 %v1504, %v1503
        %v1519 = vpack.c.b16 %v1506, %v1505
        %v1520 = vpack.c.b16 %v1508, %v1507
        %v1521 = vpack.c.b16 %v1510, %v1509
        %v1522 = vpack.c.b16 %v1512, %v1511
        %v1523 = vpack.c.b16 %v1514, %v1513
        %v1524 = vpack.c.b16 %v1516, %v1515
        %1533 = vmatprep.subr.bf16.mxu0 0
        %1534 = vmatpush1.bf16.msra.mxu0 %v1517
        %1535 = vmatprep.subr.bf16.mxu0 0
        %1536 = vmatpush1.bf16.msra.mxu0 %v1518
        %1537 = vmatprep.subr.bf16.mxu0 0
        %1538 = vmatpush1.bf16.msra.mxu0 %v1519
        %1539 = vmatprep.subr.bf16.mxu0 0
        %1540 = vmatpush1.bf16.msra.mxu0 %v1520
        %1541 = vmatprep.subr.bf16.mxu0 0
        %1542 = vmatpush1.bf16.msra.mxu0 %v1521
        %1543 = vmatprep.subr.bf16.mxu0 0
        %1544 = vmatpush1.bf16.msra.mxu0 %v1522
        %1545 = vmatprep.subr.bf16.mxu0 0
        %1546 = vmatpush1.bf16.msra.mxu0 %v1523
        %1547 = vmatprep.subr.bf16.mxu0 0
        %1548 = vmatpush1.bf16.msra.mxu0 %v1524
        %1549 = vmatprep.subr.bf16.mxu0 0
        %1550 = vmatpush1.bf16.msra.mxu0 0
        %1551 = vmatprep.subr.bf16.mxu0 0
        %1552 = vmatpush1.bf16.msra.mxu0 0
        %1553 = vmatprep.subr.bf16.mxu0 0
        %1554 = vmatpush1.bf16.msra.mxu0 0
        %1555 = vmatprep.subr.bf16.mxu0 0
        %1556 = vmatpush1.bf16.msra.mxu0 0
        %1557 = vmatprep.subr.bf16.mxu0 0
        %1558 = vmatpush1.bf16.msra.mxu0 0
        %1559 = vmatprep.subr.bf16.mxu0 0
        %1560 = vmatpush1.bf16.msra.mxu0 0
        %1561 = vmatprep.subr.bf16.mxu0 0
        %1562 = vmatpush1.bf16.msra.mxu0 0
        %1563 = vmatprep.subr.bf16.mxu0 0
        %1564 = vmatpush1.bf16.msra.mxu0 0
        %1565 = vmatprep.mubr.bf16.mxu0 0
        %1566 = vmatmul.mubr.bf16.gmra.mrb[0].mxu0 %v1483
        %v1567 = vpop.f32.mrb[0].mxu0
        %v1568 = vadd.f32 %v1484, %v1567
        %v1569 = vpop.f32.mrb[0].mxu0
        %v1570 = vpop.f32.mrb[0].mxu0
        %v1571 = vpop.f32.mrb[0].mxu0
        %1572 = vdwg.mxu0
        %v1573 = vmul.f32 %v1568, 0.5
        %v1574 = vtanh.pop %v1573
        %v1575 = vadd.f32 %v1574, 1.0
        %v1576 = vmul.f32 %v1575, 0.5
        %v1577 = vmul.f32 %v1568, %v1576
        %s1578 = scalar_lea.vmem %s1, 384
        %v1579 = vld [vmem:[%s1578] sm:$0xf]
        %v1580 = vld [vmem:[%s1578 + $0x4] sm:$0xf]
        %v1581 = vld [vmem:[%s1578 + $0x8] sm:$0xf]
        %v1582 = vld [vmem:[%s1578 + $0xc] sm:$0xf]
        %v1583 = vld [vmem:[%s1578 + $0x10] sm:$0xf]
        %v1584 = vld [vmem:[%s1578 + $0x14] sm:$0xf]
        %v1585 = vld [vmem:[%s1578 + $0x18] sm:$0xf]
        %v1586 = vld [vmem:[%s1578 + $0x1c] sm:$0xf]
        %v1587 = vld [vmem:[%s1578 + $0x20] sm:$0xf]
        %v1588 = vld [vmem:[%s1578 + $0x24] sm:$0xf]
        %v1589 = vld [vmem:[%s1578 + $0x28] sm:$0xf]
        %v1590 = vld [vmem:[%s1578 + $0x2c] sm:$0xf]
        %v1591 = vld [vmem:[%s1578 + $0x30] sm:$0xf]
        %v1592 = vld [vmem:[%s1578 + $0x34] sm:$0xf]
        %v1593 = vld [vmem:[%s1578 + $0x38] sm:$0xf]
        %v1594 = vld [vmem:[%s1578 + $0x3c] sm:$0xf]
        %v1595 = vpack.c.bf16 %v1577, %v1577
        %v1596 = vld [vmem:[%s2 + $0x8] sm:$0x1]
        %v1613 = vunpack.c.l.b16 %v1579
        %v1614 = vunpack.c.l.b16 %v1580
        %v1615 = vunpack.c.l.b16 %v1581
        %v1616 = vunpack.c.l.b16 %v1582
        %v1617 = vunpack.c.l.b16 %v1583
        %v1618 = vunpack.c.l.b16 %v1584
        %v1619 = vunpack.c.l.b16 %v1585
        %v1620 = vunpack.c.l.b16 %v1586
        %v1621 = vunpack.c.l.b16 %v1587
        %v1622 = vunpack.c.l.b16 %v1588
        %v1623 = vunpack.c.l.b16 %v1589
        %v1624 = vunpack.c.l.b16 %v1590
        %v1625 = vunpack.c.l.b16 %v1591
        %v1626 = vunpack.c.l.b16 %v1592
        %v1627 = vunpack.c.l.b16 %v1593
        %v1628 = vunpack.c.l.b16 %v1594
        %v1629 = vpack.c.b16 %v1614, %v1613
        %v1630 = vpack.c.b16 %v1616, %v1615
        %v1631 = vpack.c.b16 %v1618, %v1617
        %v1632 = vpack.c.b16 %v1620, %v1619
        %v1633 = vpack.c.b16 %v1622, %v1621
        %v1634 = vpack.c.b16 %v1624, %v1623
        %v1635 = vpack.c.b16 %v1626, %v1625
        %v1636 = vpack.c.b16 %v1628, %v1627
        %1645 = vmatprep.subr.bf16.mxu0 0
        %1646 = vmatpush1.bf16.msra.mxu0 %v1629
        %1647 = vmatprep.subr.bf16.mxu0 0
        %1648 = vmatpush1.bf16.msra.mxu0 %v1630
        %1649 = vmatprep.subr.bf16.mxu0 0
        %1650 = vmatpush1.bf16.msra.mxu0 %v1631
        %1651 = vmatprep.subr.bf16.mxu0 0
        %1652 = vmatpush1.bf16.msra.mxu0 %v1632
        %1653 = vmatprep.subr.bf16.mxu0 0
        %1654 = vmatpush1.bf16.msra.mxu0 %v1633
        %1655 = vmatprep.subr.bf16.mxu0 0
        %1656 = vmatpush1.bf16.msra.mxu0 %v1634
        %1657 = vmatprep.subr.bf16.mxu0 0
        %1658 = vmatpush1.bf16.msra.mxu0 %v1635
        %1659 = vmatprep.subr.bf16.mxu0 0
        %1660 = vmatpush1.bf16.msra.mxu0 %v1636
        %1661 = vmatprep.subr.bf16.mxu0 0
        %1662 = vmatpush1.bf16.msra.mxu0 0
        %1663 = vmatprep.subr.bf16.mxu0 0
        %1664 = vmatpush1.bf16.msra.mxu0 0
        %1665 = vmatprep.subr.bf16.mxu0 0
        %1666 = vmatpush1.bf16.msra.mxu0 0
        %1667 = vmatprep.subr.bf16.mxu0 0
        %1668 = vmatpush1.bf16.msra.mxu0 0
        %1669 = vmatprep.subr.bf16.mxu0 0
        %1670 = vmatpush1.bf16.msra.mxu0 0
        %1671 = vmatprep.subr.bf16.mxu0 0
        %1672 = vmatpush1.bf16.msra.mxu0 0
        %1673 = vmatprep.subr.bf16.mxu0 0
        %1674 = vmatpush1.bf16.msra.mxu0 0
        %1675 = vmatprep.subr.bf16.mxu0 0
        %1676 = vmatpush1.bf16.msra.mxu0 0
        %1677 = vmatprep.mubr.bf16.mxu0 0
        %1678 = vmatmul.mubr.bf16.gmra.mrb[0].mxu0 %v1595
        %v1679 = vpop.f32.mrb[0].mxu0
        %v1680 = vadd.f32 %v1596, %v1679
        %v1681 = vpop.f32.mrb[0].mxu0
        %v1682 = vpop.f32.mrb[0].mxu0
        %v1683 = vpop.f32.mrb[0].mxu0
        %1684 = vdwg.mxu0
        %v1685 = vmul.f32 %v1680, 0.5
        %v1686 = vtanh.pop %v1685
        %v1687 = vadd.f32 %v1686, 1.0
        %v1688 = vmul.f32 %v1687, 0.5
        %v1689 = vlaneseq
        %v1690 = vshrl.u32 %v1689, 7
        %v1691 = vsub.s32 0, %v1690
        %v1692 = vrot.slane %v1688, %v1691
        %v1693 = vmul.f32 %v1451, %v1692
        %v1694 = vmul.f32 %v1452, %v1692
        %s1695 = scalar_lea.vmem %s1, 448
        %v1696 = vld [vmem:[%s1695] sm:$0xf]
        %v1697 = vld [vmem:[%s1695 + $0x4] sm:$0xf]
        %v1698 = vld [vmem:[%s1695 + $0x8] sm:$0xf]
        %v1699 = vld [vmem:[%s1695 + $0xc] sm:$0xf]
        %v1700 = vld [vmem:[%s1695 + $0x10] sm:$0xf]
        %v1701 = vld [vmem:[%s1695 + $0x14] sm:$0xf]
        %v1702 = vld [vmem:[%s1695 + $0x18] sm:$0xf]
        %v1703 = vld [vmem:[%s1695 + $0x1c] sm:$0xf]
        %v1704 = vld [vmem:[%s1695 + $0x20] sm:$0xf]
        %v1705 = vld [vmem:[%s1695 + $0x24] sm:$0xf]
        %v1706 = vld [vmem:[%s1695 + $0x28] sm:$0xf]
        %v1707 = vld [vmem:[%s1695 + $0x2c] sm:$0xf]
        %v1708 = vld [vmem:[%s1695 + $0x30] sm:$0xf]
        %v1709 = vld [vmem:[%s1695 + $0x34] sm:$0xf]
        %v1710 = vld [vmem:[%s1695 + $0x38] sm:$0xf]
        %v1711 = vld [vmem:[%s1695 + $0x3c] sm:$0xf]
        %v1712 = vpack.c.bf16 %v1694, %v1693
        %v1713 = vld [vmem:[%s2 + $0x9] sm:$0x1]
        %v1714 = vlaneseq
        %v1715 = vshrl.u32 %v1714, 7
        %v1716 = vsub.s32 0, %v1715
        %v1717 = vrot.slane %v1713, %v1716
        %v1719 = vshrl.u32 %v1712, 16
        %v1721 = vrot.slane %v1719, 2
        %v1722 = vshll.u32 %v1712, 16
        %v1724 = vrot.slane %v1722, 3
        %v1725 = vor.u32 %v1721, %v1724
        %v1743 = vunpack.c.l.b16 %v1696
        %v1744 = vunpack.c.l.b16 %v1697
        %v1745 = vunpack.c.l.b16 %v1698
        %v1746 = vunpack.c.l.b16 %v1699
        %v1747 = vunpack.c.l.b16 %v1700
        %v1748 = vunpack.c.l.b16 %v1701
        %v1749 = vunpack.c.l.b16 %v1702
        %v1750 = vunpack.c.l.b16 %v1703
        %v1751 = vunpack.c.l.b16 %v1704
        %v1752 = vunpack.c.l.b16 %v1705
        %v1753 = vunpack.c.l.b16 %v1706
        %v1754 = vunpack.c.l.b16 %v1707
        %v1755 = vunpack.c.l.b16 %v1708
        %v1756 = vunpack.c.l.b16 %v1709
        %v1757 = vunpack.c.l.b16 %v1710
        %v1758 = vunpack.c.l.b16 %v1711
        %v1759 = vpack.c.b16 %v1744, %v1743
        %v1760 = vpack.c.b16 %v1746, %v1745
        %v1761 = vpack.c.b16 %v1748, %v1747
        %v1762 = vpack.c.b16 %v1750, %v1749
        %v1763 = vpack.c.b16 %v1752, %v1751
        %v1764 = vpack.c.b16 %v1754, %v1753
        %v1765 = vpack.c.b16 %v1756, %v1755
        %v1766 = vpack.c.b16 %v1758, %v1757
        %1775 = vmatprep.subr.bf16.mxu0 0
        %1776 = vmatpush1.bf16.msra.mxu0 %v1759
        %1777 = vmatprep.subr.bf16.mxu0 0
        %1778 = vmatpush1.bf16.msra.mxu0 %v1760
        %1779 = vmatprep.subr.bf16.mxu0 0
        %1780 = vmatpush1.bf16.msra.mxu0 %v1761
        %1781 = vmatprep.subr.bf16.mxu0 0
        %1782 = vmatpush1.bf16.msra.mxu0 %v1762
        %1783 = vmatprep.subr.bf16.mxu0 0
        %1784 = vmatpush1.bf16.msra.mxu0 %v1763
        %1785 = vmatprep.subr.bf16.mxu0 0
        %1786 = vmatpush1.bf16.msra.mxu0 %v1764
        %1787 = vmatprep.subr.bf16.mxu0 0
        %1788 = vmatpush1.bf16.msra.mxu0 %v1765
        %1789 = vmatprep.subr.bf16.mxu0 0
        %1790 = vmatpush1.bf16.msra.mxu0 %v1766
        %1791 = vmatprep.subr.bf16.mxu0 0
        %1792 = vmatpush1.bf16.msra.mxu0 0
        %1793 = vmatprep.subr.bf16.mxu0 0
        %1794 = vmatpush1.bf16.msra.mxu0 0
        %1795 = vmatprep.subr.bf16.mxu0 0
        %1796 = vmatpush1.bf16.msra.mxu0 0
        %1797 = vmatprep.subr.bf16.mxu0 0
        %1798 = vmatpush1.bf16.msra.mxu0 0
        %1799 = vmatprep.subr.bf16.mxu0 0
        %1800 = vmatpush1.bf16.msra.mxu0 0
        %1801 = vmatprep.subr.bf16.mxu0 0
        %1802 = vmatpush1.bf16.msra.mxu0 0
        %1803 = vmatprep.subr.bf16.mxu0 0
        %1804 = vmatpush1.bf16.msra.mxu0 0
        %1805 = vmatprep.subr.bf16.mxu0 0
        %1806 = vmatpush1.bf16.msra.mxu0 0
        %1807 = vmatprep.mubr.bf16.mxu0 0
        %1808 = vmatmul.mubr.bf16.gmra.mrb[0].mxu0 %v1725
        %v1809 = vpop.f32.mrb[0].mxu0
        %v1810 = vadd.f32 %v1717, %v1809
        %v1811 = vpop.f32.mrb[0].mxu0
        %v1812 = vpop.f32.mrb[0].mxu0
        %v1813 = vpop.f32.mrb[0].mxu0
        %1814 = vdwg.mxu0
        %v1815 = vmul.f32 %v1810, 0.5
        %v1816 = vtanh.pop %v1815
        %v1817 = vadd.f32 %v1816, 1.0
        %v1818 = vmul.f32 %v1817, 0.5
        %v1819 = vmul.f32 %v1810, %v1818
        %s1820 = scalar_lea.vmem %s1, 512
        %v1821 = vld [vmem:[%s1820] sm:$0xf]
        %v1822 = vld [vmem:[%s1820 + $0x4] sm:$0xf]
        %v1823 = vld [vmem:[%s1820 + $0x8] sm:$0xf]
        %v1824 = vld [vmem:[%s1820 + $0xc] sm:$0xf]
        %v1825 = vld [vmem:[%s1820 + $0x10] sm:$0xf]
        %v1826 = vld [vmem:[%s1820 + $0x14] sm:$0xf]
        %v1827 = vld [vmem:[%s1820 + $0x18] sm:$0xf]
        %v1828 = vld [vmem:[%s1820 + $0x1c] sm:$0xf]
        %v1829 = vld [vmem:[%s1820 + $0x20] sm:$0xf]
        %v1830 = vld [vmem:[%s1820 + $0x24] sm:$0xf]
        %v1831 = vld [vmem:[%s1820 + $0x28] sm:$0xf]
        %v1832 = vld [vmem:[%s1820 + $0x2c] sm:$0xf]
        %v1833 = vld [vmem:[%s1820 + $0x30] sm:$0xf]
        %v1834 = vld [vmem:[%s1820 + $0x34] sm:$0xf]
        %v1835 = vld [vmem:[%s1820 + $0x38] sm:$0xf]
        %v1836 = vld [vmem:[%s1820 + $0x3c] sm:$0xf]
        %v1837 = vpack.c.bf16 %v1819, %v1819
        %v1838 = vld [vmem:[%s2 + $0xa] sm:$0x1]
        %v1839 = vlaneseq
        %v1840 = vshrl.u32 %v1839, 7
        %v1841 = vsub.s32 0, %v1840
        %v1842 = vrot.slane %v1838, %v1841
        %v1859 = vunpack.c.l.b16 %v1821
        %v1860 = vunpack.c.l.b16 %v1822
        %v1861 = vunpack.c.l.b16 %v1823
        %v1862 = vunpack.c.l.b16 %v1824
        %v1863 = vunpack.c.l.b16 %v1825
        %v1864 = vunpack.c.l.b16 %v1826
        %v1865 = vunpack.c.l.b16 %v1827
        %v1866 = vunpack.c.l.b16 %v1828
        %v1867 = vunpack.c.l.b16 %v1829
        %v1868 = vunpack.c.l.b16 %v1830
        %v1869 = vunpack.c.l.b16 %v1831
        %v1870 = vunpack.c.l.b16 %v1832
        %v1871 = vunpack.c.l.b16 %v1833
        %v1872 = vunpack.c.l.b16 %v1834
        %v1873 = vunpack.c.l.b16 %v1835
        %v1874 = vunpack.c.l.b16 %v1836
        %v1875 = vpack.c.b16 %v1860, %v1859
        %v1876 = vpack.c.b16 %v1862, %v1861
        %v1877 = vpack.c.b16 %v1864, %v1863
        %v1878 = vpack.c.b16 %v1866, %v1865
        %v1879 = vpack.c.b16 %v1868, %v1867
        %v1880 = vpack.c.b16 %v1870, %v1869
        %v1881 = vpack.c.b16 %v1872, %v1871
        %v1882 = vpack.c.b16 %v1874, %v1873
        %1891 = vmatprep.subr.bf16.mxu0 0
        %1892 = vmatpush1.bf16.msra.mxu0 %v1875
        %1893 = vmatprep.subr.bf16.mxu0 0
        %1894 = vmatpush1.bf16.msra.mxu0 %v1876
        %1895 = vmatprep.subr.bf16.mxu0 0
        %1896 = vmatpush1.bf16.msra.mxu0 %v1877
        %1897 = vmatprep.subr.bf16.mxu0 0
        %1898 = vmatpush1.bf16.msra.mxu0 %v1878
        %1899 = vmatprep.subr.bf16.mxu0 0
        %1900 = vmatpush1.bf16.msra.mxu0 %v1879
        %1901 = vmatprep.subr.bf16.mxu0 0
        %1902 = vmatpush1.bf16.msra.mxu0 %v1880
        %1903 = vmatprep.subr.bf16.mxu0 0
        %1904 = vmatpush1.bf16.msra.mxu0 %v1881
        %1905 = vmatprep.subr.bf16.mxu0 0
        %1906 = vmatpush1.bf16.msra.mxu0 %v1882
        %1907 = vmatprep.subr.bf16.mxu0 0
        %1908 = vmatpush1.bf16.msra.mxu0 0
        %1909 = vmatprep.subr.bf16.mxu0 0
        %1910 = vmatpush1.bf16.msra.mxu0 0
        %1911 = vmatprep.subr.bf16.mxu0 0
        %1912 = vmatpush1.bf16.msra.mxu0 0
        %1913 = vmatprep.subr.bf16.mxu0 0
        %1914 = vmatpush1.bf16.msra.mxu0 0
        %1915 = vmatprep.subr.bf16.mxu0 0
        %1916 = vmatpush1.bf16.msra.mxu0 0
        %1917 = vmatprep.subr.bf16.mxu0 0
        %1918 = vmatpush1.bf16.msra.mxu0 0
        %1919 = vmatprep.subr.bf16.mxu0 0
        %1920 = vmatpush1.bf16.msra.mxu0 0
        %1921 = vmatprep.subr.bf16.mxu0 0
        %1922 = vmatpush1.bf16.msra.mxu0 0
        %1923 = vmatprep.mubr.bf16.mxu0 0
        %1924 = vmatmul.mubr.bf16.gmra.mrb[0].mxu0 %v1837
        %v1925 = vpop.f32.mrb[0].mxu0
        %v1926 = vadd.f32 %v1842, %v1925
        %v1927 = vpop.f32.mrb[0].mxu0
        %v1928 = vpop.f32.mrb[0].mxu0
        %v1929 = vpop.f32.mrb[0].mxu0
        %1930 = vdwg.mxu0
        %vm1931 = vcmask 785408
        %1932 = vst.msk [vmem:[%s217] sm:$0xff] %vm1931, %v1926
        %s1933 = sand.u32 %s137, 1
        %s1934 = scalar_lea.sflag [#allocation3], %s1933
        %s1935 = sand.u32 %s137, 1
        %s1936 = smul.addr %s1935, 8
        %s1937 = scalar_lea.vmem [#allocation2], %s1936
        // Predicated region
        $region41: #{efficientnet_encoder_forward.1} parent=39 // pred_check
          %p1938 = pneg %p147
        $region42: #{efficientnet_encoder_forward.1} parent=39 // pred_check_branch
          %1940 = sbr.rel (%p1938) target = $region44
        $region43: #{efficientnet_encoder_forward.1} parent=39 // pred_region
          %s1942 = ssub.s32 128, 128
          %1943 = vsyncadd %s1934, %s1942
          %s1944 = smul.addr %s19, 128
          %s1945 = scalar_lea.hbm %s5, %s1944
          %s1947 = sshll.u32 %s1937, 4
          %s1948 = int_to_ptr.vmem [resolvable:$true] %s1947
          %1950 = dma.vmem_to_hbm [thread:$0]  %s1948, 128, %s1945, %s1934
        $region44: #{efficientnet_encoder_forward.1} parent=39 // pred_fallthru
          _
      $region40: #{efficientnet_encoder_forward.1} parent=5 // pred_fallthru
        _
      %p1951 = scmp.le.s32.totalorder 2, %s14
      // Predicated region
      $region45: #{efficientnet_encoder_forward.1} parent=5 // pred_check
        %p1952 = pneg %p1951
      $region46: #{efficientnet_encoder_forward.1} parent=5 // pred_check_branch
        %1954 = sbr.rel (%p1952) target = $region48
      $region47: #{efficientnet_encoder_forward.1} parent=5 // pred_region
        %s1955 = ssub.s32 %s14, 2
        // Predicated region
        $region49: #{efficientnet_encoder_forward.1} parent=47 // pred_check
          %p1956 = pneg %p153
        $region50: #{efficientnet_encoder_forward.1} parent=47 // pred_check_branch
          %1958 = sbr.rel (%p1956) target = $region52
        $region51: #{efficientnet_encoder_forward.1} parent=47 // pred_region
          %s1959 = sand.u32 %s138, 1
          %s1960 = scalar_lea.sflag [#allocation3], %s1959
          %s1961 = sand.u32 %s138, 1
          %s1962 = smul.addr %s1961, 8
          %s1963 = scalar_lea.vmem [#allocation2], %s1962
          %1964 = dma.done %s1960, 128
        $region52: #{efficientnet_encoder_forward.1} parent=47 // pred_fallthru
          _
      $region48: #{efficientnet_encoder_forward.1} parent=5 // pred_fallthru
        _
    $region6: #{efficientnet_encoder_forward.1} parent=1 // loop_footer
      %s18 = sadd.s32 1, %s14
    $region7: #{efficientnet_encoder_forward.1} parent=1 // loop_footer_branch
      %13 = sbr.rel target = $region3
    $region8: #{efficientnet_encoder_forward.1} parent=1 // loop_exit
      _
    %1965 = vsyncpa [#allocation3], 1
    %s1966 = scalar_lea.sflag [#allocation3], 1
    %1967 = vsyncpa %s1966, 1

</llo_original>
